<compile_context>
chip_gen: v5e
topology: v5e:2x2
jax: 0.10.0
libtpu: 0.0.40
codegen_flags: <defaults>
</compile_context>

<pallas_src>
import jax
import jax.numpy as jnp
from jax.experimental import pallas as pl
from jax.experimental.pallas import tpu as pltpu


def _round_up(x, m):
    return (x + m - 1) // m * m


def _tpu_vmem_bytes():
    """Physical per-core VMEM capacity; falls back to 128 MiB if unknown."""
    try:
        info = pltpu.get_tpu_info()
        for attr in ("vmem_capacity_bytes", "vmem_bytes", "vmem_size_bytes"):
            v = getattr(info, attr, None)
            if v:
                return int(v)
    except Exception:
        pass
    return 128 * 1024 * 1024


def _head_kernel(x_ref, w3_ref, scale_ref, shift_ref, w1_ref, b1_ref, o_ref,
                 xsh_ref, acc_ref):
    """One (batch, Cin-tile) grid step of conv3x3 -> BN -> ReLU -> conv1x1 -> log_softmax.

    Shapes (all static):
      x_ref:     (1, H, W, Ct)          bf16 input, one Cin tile
      w3_ref:    (1, 3, 3, Ct, Cmid)    3x3 conv weight block (bf16, contiguous)
      scale_ref: (1, Cmid)              folded BN scale (f32)
      shift_ref: (1, Cmid)              folded BN shift (f32)
      w1_ref:    (Cmid, Ncls)           1x1 conv weight (bf16, classes padded to 128x)
      b1_ref:    (1, Ncls)              1x1 conv bias (f32, pad classes = -1e30)
      o_ref:     (1, H, Wp, Ncls)       log-probs in the padded-width frame
      xsh_ref:   (3, H+2, Wp, Ct)       bf16 scratch: three dx-shifted zero-padded copies
      acc_ref:   (H*Wp, Cmid)           f32 conv accumulator (persists across Cin tiles)
    """
    c = pl.program_id(1)
    num_c = pl.num_programs(1)

    H = o_ref.shape[1]
    Wp = o_ref.shape[2]
    W = x_ref.shape[2]
    Ct = x_ref.shape[3]
    Hp = xsh_ref.shape[1]
    Ncls = o_ref.shape[3]

    @pl.when(c == 0)
    def _init():
        # Zero the accumulator and ONLY the halo of the shifted-input scratch:
        # top/bottom rows plus left/right pad-column strips.  The interior is
        # overwritten below on every Cin step, so a full-scratch zero is wasted
        # store traffic.  (The column strips are a superset of each copy's halo
        # columns; overlapping interior columns are rewritten right after.)
        acc_ref[...] = jnp.zeros_like(acc_ref)
        zrow = jnp.zeros((1, Wp, Ct), jnp.bfloat16)
        zleft = jnp.zeros((Hp, 2, Ct), jnp.bfloat16)
        zright = jnp.zeros((Hp, Wp - W, Ct), jnp.bfloat16)
        for dx in range(3):
            xsh_ref[dx, pl.ds(0, 1), :, :] = zrow
            xsh_ref[dx, pl.ds(H + 1, 1), :, :] = zrow
            xsh_ref[dx, :, pl.ds(0, 2), :] = zleft
            xsh_ref[dx, :, pl.ds(W, Wp - W), :] = zright

    # Interior: three dx-shifted copies of this Cin tile (already bf16 from the
    # wrapper, no per-step cast).  xsh[dx][r, u, :] == x_padded[r, u+dx-1, :].
    xb = x_ref[0]                                            # (H, W, Ct) bf16
    for dx in range(3):
        xsh_ref[dx, pl.ds(1, H), pl.ds(2 - dx, W), :] = xb

    # 3x3 conv as 9 MXU matmuls.  Flattening (Hp, Wp, Ct) -> (Hp*Wp, Ct) is a
    # layout-preserving view because Wp % 8 == 0, and every dy offset (dy*Wp)
    # is sublane-aligned, so no per-tap relayout copies are generated.
    # Accumulation frame: acc[y*Wp + (x+1)] == conv_out[y, x].
    acc = acc_ref[...]
    for dx in range(3):
        xflat = xsh_ref[dx].reshape(Hp * Wp, Ct)
        for dy in range(3):
            lhs = xflat[dy * Wp:dy * Wp + H * Wp, :]
            acc = acc + jnp.dot(lhs, w3_ref[0, dy, dx],
                                preferred_element_type=jnp.float32)

    # Persist the partial sum only if another Cin step follows.
    @pl.when(c < num_c - 1)
    def _carry():
        acc_ref[...] = acc

    # Epilogue on the last Cin tile, using the live `acc` value (no redundant
    # accumulator store + reload): folded BN + ReLU + 1x1 conv + log_softmax.
    @pl.when(c == num_c - 1)
    def _finalize():
        y = acc * scale_ref[...] + shift_ref[...]            # (H*Wp, Cmid), f32
        y = jnp.maximum(y, 0.0).astype(jnp.bfloat16)
        z = jnp.dot(y, w1_ref[...], preferred_element_type=jnp.float32)
        z = z + b1_ref[...]                                  # pad classes -> ~-1e30
        m = jnp.max(z, axis=-1, keepdims=True)
        e = z - m
        lse = jnp.log(jnp.sum(jnp.exp(e), axis=-1, keepdims=True))
        o_ref[...] = (e - lse).reshape(1, H, Wp, Ncls)


def head_logsoftmax(x_nhwc, w3, bn_scale, bn_shift, w1, b1, *, cin_tile=None):
    """conv3x3(pad=1, no bias) -> folded BN -> ReLU -> conv1x1(+bias) -> log_softmax.

    x_nhwc: (N, H, W, Cin).  Returns (N, H, W, Ncls) float32 log-probabilities.
    Note: MXU inputs are bf16 (weights + activations), f32 accumulation -- an
    intentional, documented deviation (~1e-2 rel) from the f32 PyTorch conv.
    """
    N, H, W, Cin = x_nhwc.shape
    Cmid = w3.shape[3]
    Ncls = w1.shape[1]

    LANE = 128
    Cin_p = _round_up(Cin, LANE)
    Cmid_p = _round_up(Cmid, LANE)
    Ncls_p = _round_up(Ncls, LANE)
    Wp = _round_up(W + 2, 8)
    Hp = H + 2

    # Generation-aware knobs: 64 MiB-VMEM parts (v7x-class) get a smaller Cin
    # tile and a vmem limit with compiler headroom; 128 MiB parts get ct=512
    # and a raised limit so larger tiles / deeper buffering can be funded.
    vmem_phys = _tpu_vmem_bytes()
    small_vmem = vmem_phys <= 96 * 1024 * 1024
    ct_cap = 256 if small_vmem else 512
    vmem_limit = (min(vmem_phys - 12 * 1024 * 1024, 52 * 1024 * 1024)
                  if small_vmem else 100 * 1024 * 1024)

    # Cin reduction tile (grid axis 1).
    ct = None
    if cin_tile is not None:
        cand = min(cin_tile, Cin_p)
        if Cin_p % cand == 0:
            ct = cand
    if ct is None:
        for cand in (512, 256, 128):
            if cand <= ct_cap and Cin_p % cand == 0:
                ct = cand
                break
    if ct is None:
        ct = 128
    n_ct = Cin_p // ct

    # Activations: bf16 cast in the wrapper (fuses with the caller's transpose /
    # this pad) -- halves x DMA bytes and the double-buffered x block.
    x_nhwc = x_nhwc.astype(jnp.bfloat16)
    if Cin_p != Cin:
        x_nhwc = jnp.pad(x_nhwc, ((0, 0), (0, 0), (0, 0), (0, Cin_p - Cin)))

    # Weights / BN constants.  w3 is pre-blocked to (n_ct, 3, 3, ct, Cmid_p) so
    # each grid step's weight block is one contiguous DMA.
    w3_p = jnp.pad(w3, ((0, 0), (0, 0), (0, Cin_p - Cin),
                        (0, Cmid_p - Cmid))).astype(jnp.bfloat16)
    w3_blk = w3_p.reshape(3, 3, n_ct, ct, Cmid_p).transpose(2, 0, 1, 3, 4)
    scale_p = jnp.pad(bn_scale.reshape(1, -1).astype(jnp.float32),
                      ((0, 0), (0, Cmid_p - Cmid)))
    shift_p = jnp.pad(bn_shift.reshape(1, -1).astype(jnp.float32),
                      ((0, 0), (0, Cmid_p - Cmid)))
    w1_p = jnp.pad(w1, ((0, Cmid_p - Cmid),
                        (0, Ncls_p - Ncls))).astype(jnp.bfloat16)
    # Pad classes get a very negative bias so exp() underflows to 0 and the
    # log_softmax of the real classes is unchanged.
    b1_p = jnp.pad(b1.reshape(1, -1).astype(jnp.float32),
                   ((0, 0), (0, Ncls_p - Ncls)), constant_values=-1e30)

    # Advisory cost estimate so XLA schedules neighboring ops sensibly.
    flops = 2 * N * H * W * Cmid_p * (9 * Cin_p + Ncls_p)
    transcendentals = N * H * Wp * (Ncls_p + 1)
    bytes_accessed = (N * H * W * Cin_p * 2
                      + N * (9 * Cin_p * Cmid_p + Cmid_p * Ncls_p) * 2
                      + N * H * Wp * Ncls_p * 4)
    cost = pl.CostEstimate(flops=int(flops),
                           transcendentals=int(transcendentals),
                           bytes_accessed=int(bytes_accessed))

    out = pl.pallas_call(
        _head_kernel,
        out_shape=jax.ShapeDtypeStruct((N, H, Wp, Ncls_p), jnp.float32),
        grid_spec=pltpu.PrefetchScalarGridSpec(
            num_scalar_prefetch=0,
            grid=(N, n_ct),
            in_specs=[
                pl.BlockSpec((1, H, W, ct), lambda n, c: (n, 0, 0, c)),
                pl.BlockSpec((1, 3, 3, ct, Cmid_p), lambda n, c: (c, 0, 0, 0, 0)),
                pl.BlockSpec((1, Cmid_p), lambda n, c: (0, 0)),
                pl.BlockSpec((1, Cmid_p), lambda n, c: (0, 0)),
                pl.BlockSpec((Cmid_p, Ncls_p), lambda n, c: (0, 0)),
                pl.BlockSpec((1, Ncls_p), lambda n, c: (0, 0)),
            ],
            out_specs=pl.BlockSpec((1, H, Wp, Ncls_p), lambda n, c: (n, 0, 0, 0)),
            scratch_shapes=[
                pltpu.VMEM((3, Hp, Wp, ct), jnp.bfloat16),     # shifted padded copies
                pltpu.VMEM((H * Wp, Cmid_p), jnp.float32),     # conv accumulator
            ],
        ),
        compiler_params=pltpu.CompilerParams(
            dimension_semantics=("parallel", "arbitrary"),
            vmem_limit_bytes=int(vmem_limit),
        ),
        cost_estimate=cost,
    )(x_nhwc, w3_blk, scale_p, shift_p, w1_p, b1_p)

    # Drop the padded-width frame and the pad classes (keep this slice before
    # any downstream reduction -- pad lanes hold ~-1e30 log-probs).
    return out[:, :, 1:W + 1, :Ncls]


def c1_deepsup_forward(conv_out, params, *, cin_tile=None):
    """C1DeepSup.forward with use_softmax=False (training / deep-supervision path).

    conv_out: list of NCHW feature maps; uses conv_out[-1]=conv5, conv_out[-2]=conv4.
    Returns (log_softmax(main logits), log_softmax(deepsup logits)) in NCHW.
    """
    # TODO(synk): the use_softmax=True inference branch (bilinear interpolate to
    #             segSize + softmax over channels) is not implemented.
    conv5 = conv_out[-1]
    conv4 = conv_out[-2]

    # NCHW -> NHWC so channels land on TPU lanes; bf16 cast fuses with the
    # transpose.  If the surrounding model can stay NHWC, these transposes
    # (full HBM relayouts) and the NCHW ones below should be dropped.
    conv5_nhwc = jnp.transpose(conv5, (0, 2, 3, 1)).astype(jnp.bfloat16)
    conv4_nhwc = jnp.transpose(conv4, (0, 2, 3, 1)).astype(jnp.bfloat16)

    x = head_logsoftmax(conv5_nhwc, *params["main"], cin_tile=cin_tile)
    d = head_logsoftmax(conv4_nhwc, *params["deepsup"], cin_tile=cin_tile)

    return (jnp.transpose(x, (0, 3, 1, 2)), jnp.transpose(d, (0, 3, 1, 2)))


# ----------------------- pure-JAX reference (for validation) -----------------------
def _ref_head(x_nhwc, w3, scale, shift, w1, b1):
    """Reference matching the kernel's bf16-input / f32-accumulate arithmetic."""
    xb = x_nhwc.astype(jnp.bfloat16).astype(jnp.float32)
    w3b = w3.astype(jnp.bfloat16).astype(jnp.float32)
    y = jax.lax.conv_general_dilated(
        xb, w3b, window_strides=(1, 1), padding=((1, 1), (1, 1)),
        dimension_numbers=("NHWC", "HWIO", "NHWC"),
        precision=jax.lax.Precision.HIGHEST)
    y = y * scale.reshape(1, 1, 1, -1) + shift.reshape(1, 1, 1, -1)
    y = jnp.maximum(y, 0.0)
    yb = y.astype(jnp.bfloat16).astype(jnp.float32)
    w1b = w1.astype(jnp.bfloat16).astype(jnp.float32)
    z = jnp.einsum("nhwc,cd->nhwd", yb, w1b,
                   precision=jax.lax.Precision.HIGHEST) + b1.reshape(1, 1, 1, -1)
    return jax.nn.log_softmax(z, axis=-1)


if __name__ == "__main__":
    key = jax.random.PRNGKey(0)
    num_class = 16      # small stand-in for 150
    fc_dim = 256        # small stand-in for 2048
    N = 2
    H5 = W5 = 8         # conv5 spatial
    H4 = W4 = 16        # conv4 spatial (2x resolution, as in the real net)

    ks = jax.random.split(key, 16)

    conv5 = jax.random.normal(ks[0], (N, fc_dim, H5, W5), jnp.float32)
    conv4 = jax.random.normal(ks[1], (N, fc_dim // 2, H4, W4), jnp.float32)

    def init_branch(keys, cin, cmid, ncls):
        w3 = 0.1 * jax.random.normal(keys[0], (3, 3, cin, cmid), jnp.float32)
        gamma = 1.0 + 0.1 * jax.random.normal(keys[1], (cmid,), jnp.float32)
        beta = 0.1 * jax.random.normal(keys[2], (cmid,), jnp.float32)
        mean = 0.1 * jax.random.normal(keys[3], (cmid,), jnp.float32)
        var = jnp.abs(jax.random.normal(keys[4], (cmid,), jnp.float32)) + 0.5
        eps = 1e-5  # SynchronizedBatchNorm2d default
        scale = gamma / jnp.sqrt(var + eps)
        shift = beta - mean * scale
        w1 = 0.1 * jax.random.normal(keys[5], (cmid, ncls), jnp.float32)
        b1 = 0.1 * jax.random.normal(keys[6], (ncls,), jnp.float32)
        return (w3, scale, shift, w1, b1)

    params = {
        # cbr: fc_dim -> fc_dim//4, conv_last: fc_dim//4 -> num_class
        "main": init_branch(ks[2:9], fc_dim, fc_dim // 4, num_class),
        # cbr_deepsup: fc_dim//2 -> fc_dim//4, conv_last_deepsup: fc_dim//4 -> num_class
        "deepsup": init_branch(ks[9:16], fc_dim // 2, fc_dim // 4, num_class),
    }

    # cin_tile=128 -> the main head runs a 2-step Cin reduction (exercises the
    # accumulator carry/finalize path); the deepsup head runs a single step.
    out_main, out_deepsup = c1_deepsup_forward([conv4, conv5], params, cin_tile=128)
    jax.block_until_ready((out_main, out_deepsup))

    # Validate against a pure-JAX reference.
    ref_main = jnp.transpose(
        _ref_head(jnp.transpose(conv5, (0, 2, 3, 1)), *params["main"]), (0, 3, 1, 2))
    ref_deep = jnp.transpose(
        _ref_head(jnp.transpose(conv4, (0, 2, 3, 1)), *params["deepsup"]), (0, 3, 1, 2))

    assert out_main.shape == (N, num_class, H5, W5)
    assert out_deepsup.shape == (N, num_class, H4, W4)
    assert jnp.allclose(out_main, ref_main, rtol=2e-2, atol=2e-2), \
        float(jnp.max(jnp.abs(out_main - ref_main)))
    assert jnp.allclose(out_deepsup, ref_deep, rtol=2e-2, atol=2e-2), \
        float(jnp.max(jnp.abs(out_deepsup - ref_deep)))

    print("KERNEL_OK")
</pallas_src>

<mosaic_0001>
module attributes {stable_mosaic.version = 11 : i64} {
  func.func @_head_kernel(%arg0: i32, %arg1: i32, %arg2: memref<1x8x8x128xbf16, #tpu.memory_space<vmem>>, %arg3: memref<1x3x3x128x128xbf16, #tpu.memory_space<vmem>>, %arg4: memref<1x128xf32, #tpu.memory_space<vmem>>, %arg5: memref<1x128xf32, #tpu.memory_space<vmem>>, %arg6: memref<128x128xbf16, #tpu.memory_space<vmem>>, %arg7: memref<1x128xf32, #tpu.memory_space<vmem>>, %arg8: memref<1x8x16x128xf32, #tpu.memory_space<vmem>>, %arg9: memref<3x10x16x128xbf16, #tpu.memory_space<vmem>>, %arg10: memref<128x128xf32, #tpu.memory_space<vmem>>) attributes {dimension_semantics = [#tpu.dimension_semantics<parallel>, #tpu.dimension_semantics<arbitrary>], iteration_bounds = array<i64: 2, 2>, scalar_prefetch = 0 : i64, scratch_operands = 2 : i64, tpu.core_type = #tpu.core_type<tc>, window_params = [{transform_indices = @transform_0, window_bounds = array<i64: 1, 8, 8, 128>}, {transform_indices = @transform_1, window_bounds = array<i64: 1, 3, 3, 128, 128>}, {pipeline_mode = #tpu.pipeline_mode<synchronous>, transform_indices = @transform_2, window_bounds = array<i64: 1, 128>}, {pipeline_mode = #tpu.pipeline_mode<synchronous>, transform_indices = @transform_3, window_bounds = array<i64: 1, 128>}, {pipeline_mode = #tpu.pipeline_mode<synchronous>, transform_indices = @transform_4, window_bounds = array<i64: 128, 128>}, {pipeline_mode = #tpu.pipeline_mode<synchronous>, transform_indices = @transform_5, window_bounds = array<i64: 1, 128>}, {transform_indices = @transform_6, window_bounds = array<i64: 1, 8, 16, 128>}]} {
    %c0_i32 = arith.constant 0 : i32
    %0 = arith.cmpi eq, %arg1, %c0_i32 : i32
    %1 = arith.extui %0 : i1 to i32
    %c0_i32_0 = arith.constant 0 : i32
    %2 = arith.cmpi ne, %1, %c0_i32_0 : i32
    scf.if %2 {
      %cst_84 = arith.constant 0.000000e+00 : f32
      %75 = vector.broadcast %cst_84 : f32 to vector<128x128xf32>
      %c0_85 = arith.constant 0 : index
      %c0_86 = arith.constant 0 : index
      %76 = vector.load %arg10[%c0_85, %c0_86] : memref<128x128xf32, #tpu.memory_space<vmem>>, vector<128x128xf32>
      tpu.vector_store %arg10[%c0_85, %c0_86], %75 {strides = array<i32>} : memref<128x128xf32, #tpu.memory_space<vmem>>, vector<128x128xf32>,
      %cst_87 = arith.constant 0.000000e+00 : bf16
      %77 = vector.broadcast %cst_87 : bf16 to vector<1x16x128xbf16>
      %cst_88 = arith.constant 0.000000e+00 : bf16
      %78 = vector.broadcast %cst_88 : bf16 to vector<10x2x128xbf16>
      %cst_89 = arith.constant 0.000000e+00 : bf16
      %79 = vector.broadcast %cst_89 : bf16 to vector<10x8x128xbf16>
      %c0_90 = arith.constant 0 : index
      %c0_91 = arith.constant 0 : index
      %c0_92 = arith.constant 0 : index
      %c0_93 = arith.constant 0 : index
      %80 = vector.load %arg9[%c0_90, %c0_91, %c0_92, %c0_93] : memref<3x10x16x128xbf16, #tpu.memory_space<vmem>>, vector<1x1x16x128xbf16>
      %81 = vector.shape_cast %80 : vector<1x1x16x128xbf16> to vector<1x16x128xbf16>
      %82 = vector.shape_cast %77 : vector<1x16x128xbf16> to vector<1x1x16x128xbf16>
      tpu.vector_store %arg9[%c0_90, %c0_91, %c0_92, %c0_93], %82 {strides = array<i32>} : memref<3x10x16x128xbf16, #tpu.memory_space<vmem>>, vector<1x1x16x128xbf16>,
      %c0_94 = arith.constant 0 : index
      %c9 = arith.constant 9 : index
      %c0_95 = arith.constant 0 : index
      %c0_96 = arith.constant 0 : index
      %83 = vector.load %arg9[%c0_94, %c9, %c0_95, %c0_96] : memref<3x10x16x128xbf16, #tpu.memory_space<vmem>>, vector<1x1x16x128xbf16>
      %84 = vector.shape_cast %83 : vector<1x1x16x128xbf16> to vector<1x16x128xbf16>
      %85 = vector.shape_cast %77 : vector<1x16x128xbf16> to vector<1x1x16x128xbf16>
      tpu.vector_store %arg9[%c0_94, %c9, %c0_95, %c0_96], %85 {strides = array<i32>} : memref<3x10x16x128xbf16, #tpu.memory_space<vmem>>, vector<1x1x16x128xbf16>,
      %c0_97 = arith.constant 0 : index
      %c0_98 = arith.constant 0 : index
      %c0_99 = arith.constant 0 : index
      %c0_100 = arith.constant 0 : index
      %86 = vector.load %arg9[%c0_97, %c0_98, %c0_99, %c0_100] : memref<3x10x16x128xbf16, #tpu.memory_space<vmem>>, vector<1x10x2x128xbf16>
      %87 = vector.shape_cast %86 : vector<1x10x2x128xbf16> to vector<10x2x128xbf16>
      %88 = vector.shape_cast %78 : vector<10x2x128xbf16> to vector<1x10x2x128xbf16>
      tpu.vector_store %arg9[%c0_97, %c0_98, %c0_99, %c0_100], %88 {strides = array<i32>} : memref<3x10x16x128xbf16, #tpu.memory_space<vmem>>, vector<1x10x2x128xbf16>,
      %c0_101 = arith.constant 0 : index
      %c0_102 = arith.constant 0 : index
      %c8 = arith.constant 8 : index
      %c0_103 = arith.constant 0 : index
      %89 = vector.load %arg9[%c0_101, %c0_102, %c8, %c0_103] : memref<3x10x16x128xbf16, #tpu.memory_space<vmem>>, vector<1x10x8x128xbf16>
      %90 = vector.shape_cast %89 : vector<1x10x8x128xbf16> to vector<10x8x128xbf16>
      %91 = vector.shape_cast %79 : vector<10x8x128xbf16> to vector<1x10x8x128xbf16>
      tpu.vector_store %arg9[%c0_101, %c0_102, %c8, %c0_103], %91 {strides = array<i32>} : memref<3x10x16x128xbf16, #tpu.memory_space<vmem>>, vector<1x10x8x128xbf16>,
      %c1_104 = arith.constant 1 : index
      %c0_105 = arith.constant 0 : index
      %c0_106 = arith.constant 0 : index
      %c0_107 = arith.constant 0 : index
      %92 = vector.load %arg9[%c1_104, %c0_105, %c0_106, %c0_107] : memref<3x10x16x128xbf16, #tpu.memory_space<vmem>>, vector<1x1x16x128xbf16>
      %93 = vector.shape_cast %92 : vector<1x1x16x128xbf16> to vector<1x16x128xbf16>
      %94 = vector.shape_cast %77 : vector<1x16x128xbf16> to vector<1x1x16x128xbf16>
      tpu.vector_store %arg9[%c1_104, %c0_105, %c0_106, %c0_107], %94 {strides = array<i32>} : memref<3x10x16x128xbf16, #tpu.memory_space<vmem>>, vector<1x1x16x128xbf16>,
      %c1_108 = arith.constant 1 : index
      %c9_109 = arith.constant 9 : index
      %c0_110 = arith.constant 0 : index
      %c0_111 = arith.constant 0 : index
      %95 = vector.load %arg9[%c1_108, %c9_109, %c0_110, %c0_111] : memref<3x10x16x128xbf16, #tpu.memory_space<vmem>>, vector<1x1x16x128xbf16>
      %96 = vector.shape_cast %95 : vector<1x1x16x128xbf16> to vector<1x16x128xbf16>
      %97 = vector.shape_cast %77 : vector<1x16x128xbf16> to vector<1x1x16x128xbf16>
      tpu.vector_store %arg9[%c1_108, %c9_109, %c0_110, %c0_111], %97 {strides = array<i32>} : memref<3x10x16x128xbf16, #tpu.memory_space<vmem>>, vector<1x1x16x128xbf16>,
      %c1_112 = arith.constant 1 : index
      %c0_113 = arith.constant 0 : index
      %c0_114 = arith.constant 0 : index
      %c0_115 = arith.constant 0 : index
      %98 = vector.load %arg9[%c1_112, %c0_113, %c0_114, %c0_115] : memref<3x10x16x128xbf16, #tpu.memory_space<vmem>>, vector<1x10x2x128xbf16>
      %99 = vector.shape_cast %98 : vector<1x10x2x128xbf16> to vector<10x2x128xbf16>
      %100 = vector.shape_cast %78 : vector<10x2x128xbf16> to vector<1x10x2x128xbf16>
      tpu.vector_store %arg9[%c1_112, %c0_113, %c0_114, %c0_115], %100 {strides = array<i32>} : memref<3x10x16x128xbf16, #tpu.memory_space<vmem>>, vector<1x10x2x128xbf16>,
      %c1_116 = arith.constant 1 : index
      %c0_117 = arith.constant 0 : index
      %c8_118 = arith.constant 8 : index
      %c0_119 = arith.constant 0 : index
      %101 = vector.load %arg9[%c1_116, %c0_117, %c8_118, %c0_119] : memref<3x10x16x128xbf16, #tpu.memory_space<vmem>>, vector<1x10x8x128xbf16>
      %102 = vector.shape_cast %101 : vector<1x10x8x128xbf16> to vector<10x8x128xbf16>
      %103 = vector.shape_cast %79 : vector<10x8x128xbf16> to vector<1x10x8x128xbf16>
      tpu.vector_store %arg9[%c1_116, %c0_117, %c8_118, %c0_119], %103 {strides = array<i32>} : memref<3x10x16x128xbf16, #tpu.memory_space<vmem>>, vector<1x10x8x128xbf16>,
      %c2_120 = arith.constant 2 : index
      %c0_121 = arith.constant 0 : index
      %c0_122 = arith.constant 0 : index
      %c0_123 = arith.constant 0 : index
      %104 = vector.load %arg9[%c2_120, %c0_121, %c0_122, %c0_123] : memref<3x10x16x128xbf16, #tpu.memory_space<vmem>>, vector<1x1x16x128xbf16>
      %105 = vector.shape_cast %104 : vector<1x1x16x128xbf16> to vector<1x16x128xbf16>
      %106 = vector.shape_cast %77 : vector<1x16x128xbf16> to vector<1x1x16x128xbf16>
      tpu.vector_store %arg9[%c2_120, %c0_121, %c0_122, %c0_123], %106 {strides = array<i32>} : memref<3x10x16x128xbf16, #tpu.memory_space<vmem>>, vector<1x1x16x128xbf16>,
      %c2_124 = arith.constant 2 : index
      %c9_125 = arith.constant 9 : index
      %c0_126 = arith.constant 0 : index
      %c0_127 = arith.constant 0 : index
      %107 = vector.load %arg9[%c2_124, %c9_125, %c0_126, %c0_127] : memref<3x10x16x128xbf16, #tpu.memory_space<vmem>>, vector<1x1x16x128xbf16>
      %108 = vector.shape_cast %107 : vector<1x1x16x128xbf16> to vector<1x16x128xbf16>
      %109 = vector.shape_cast %77 : vector<1x16x128xbf16> to vector<1x1x16x128xbf16>
      tpu.vector_store %arg9[%c2_124, %c9_125, %c0_126, %c0_127], %109 {strides = array<i32>} : memref<3x10x16x128xbf16, #tpu.memory_space<vmem>>, vector<1x1x16x128xbf16>,
      %c2_128 = arith.constant 2 : index
      %c0_129 = arith.constant 0 : index
      %c0_130 = arith.constant 0 : index
      %c0_131 = arith.constant 0 : index
      %110 = vector.load %arg9[%c2_128, %c0_129, %c0_130, %c0_131] : memref<3x10x16x128xbf16, #tpu.memory_space<vmem>>, vector<1x10x2x128xbf16>
      %111 = vector.shape_cast %110 : vector<1x10x2x128xbf16> to vector<10x2x128xbf16>
      %112 = vector.shape_cast %78 : vector<10x2x128xbf16> to vector<1x10x2x128xbf16>
      tpu.vector_store %arg9[%c2_128, %c0_129, %c0_130, %c0_131], %112 {strides = array<i32>} : memref<3x10x16x128xbf16, #tpu.memory_space<vmem>>, vector<1x10x2x128xbf16>,
      %c2_132 = arith.constant 2 : index
      %c0_133 = arith.constant 0 : index
      %c8_134 = arith.constant 8 : index
      %c0_135 = arith.constant 0 : index
      %113 = vector.load %arg9[%c2_132, %c0_133, %c8_134, %c0_135] : memref<3x10x16x128xbf16, #tpu.memory_space<vmem>>, vector<1x10x8x128xbf16>
      %114 = vector.shape_cast %113 : vector<1x10x8x128xbf16> to vector<10x8x128xbf16>
      %115 = vector.shape_cast %79 : vector<10x8x128xbf16> to vector<1x10x8x128xbf16>
      tpu.vector_store %arg9[%c2_132, %c0_133, %c8_134, %c0_135], %115 {strides = array<i32>} : memref<3x10x16x128xbf16, #tpu.memory_space<vmem>>, vector<1x10x8x128xbf16>,
    } else {
    }
    %c0 = arith.constant 0 : index
    %c0_1 = arith.constant 0 : index
    %c0_2 = arith.constant 0 : index
    %c0_3 = arith.constant 0 : index
    %3 = vector.load %arg2[%c0, %c0_1, %c0_2, %c0_3] : memref<1x8x8x128xbf16, #tpu.memory_space<vmem>>, vector<1x8x8x128xbf16>
    %4 = vector.shape_cast %3 : vector<1x8x8x128xbf16> to vector<8x8x128xbf16>
    %c0_4 = arith.constant 0 : index
    %c1 = arith.constant 1 : index
    %c2 = arith.constant 2 : index
    %c0_5 = arith.constant 0 : index
    %5 = vector.load %arg9[%c0_4, %c1, %c2, %c0_5] : memref<3x10x16x128xbf16, #tpu.memory_space<vmem>>, vector<1x8x8x128xbf16>
    %6 = vector.shape_cast %5 : vector<1x8x8x128xbf16> to vector<8x8x128xbf16>
    %7 = vector.shape_cast %4 : vector<8x8x128xbf16> to vector<1x8x8x128xbf16>
    tpu.vector_store %arg9[%c0_4, %c1, %c2, %c0_5], %7 {strides = array<i32>} : memref<3x10x16x128xbf16, #tpu.memory_space<vmem>>, vector<1x8x8x128xbf16>,
    %c1_6 = arith.constant 1 : index
    %c1_7 = arith.constant 1 : index
    %c1_8 = arith.constant 1 : index
    %c0_9 = arith.constant 0 : index
    %8 = vector.load %arg9[%c1_6, %c1_7, %c1_8, %c0_9] : memref<3x10x16x128xbf16, #tpu.memory_space<vmem>>, vector<1x8x8x128xbf16>
    %9 = vector.shape_cast %8 : vector<1x8x8x128xbf16> to vector<8x8x128xbf16>
    %10 = vector.shape_cast %4 : vector<8x8x128xbf16> to vector<1x8x8x128xbf16>
    tpu.vector_store %arg9[%c1_6, %c1_7, %c1_8, %c0_9], %10 {strides = array<i32>} : memref<3x10x16x128xbf16, #tpu.memory_space<vmem>>, vector<1x8x8x128xbf16>,
    %c2_10 = arith.constant 2 : index
    %c1_11 = arith.constant 1 : index
    %c0_12 = arith.constant 0 : index
    %c0_13 = arith.constant 0 : index
    %11 = vector.load %arg9[%c2_10, %c1_11, %c0_12, %c0_13] : memref<3x10x16x128xbf16, #tpu.memory_space<vmem>>, vector<1x8x8x128xbf16>
    %12 = vector.shape_cast %11 : vector<1x8x8x128xbf16> to vector<8x8x128xbf16>
    %13 = vector.shape_cast %4 : vector<8x8x128xbf16> to vector<1x8x8x128xbf16>
    tpu.vector_store %arg9[%c2_10, %c1_11, %c0_12, %c0_13], %13 {strides = array<i32>} : memref<3x10x16x128xbf16, #tpu.memory_space<vmem>>, vector<1x8x8x128xbf16>,
    %c0_14 = arith.constant 0 : index
    %c0_15 = arith.constant 0 : index
    %14 = vector.load %arg10[%c0_14, %c0_15] : memref<128x128xf32, #tpu.memory_space<vmem>>, vector<128x128xf32>
    %c0_16 = arith.constant 0 : index
    %c0_17 = arith.constant 0 : index
    %c0_18 = arith.constant 0 : index
    %c0_19 = arith.constant 0 : index
    %15 = vector.load %arg9[%c0_16, %c0_17, %c0_18, %c0_19] : memref<3x10x16x128xbf16, #tpu.memory_space<vmem>>, vector<1x10x16x128xbf16>
    %16 = vector.shape_cast %15 : vector<1x10x16x128xbf16> to vector<10x16x128xbf16>
    %17 = vector.shape_cast %16 : vector<10x16x128xbf16> to vector<160x128xbf16>
    %18 = vector.extract_strided_slice %17 {offsets = [0, 0], sizes = [128, 128], strides = [1, 1]} : vector<160x128xbf16> to vector<128x128xbf16>
    %c0_20 = arith.constant 0 : index
    %c0_21 = arith.constant 0 : index
    %c0_22 = arith.constant 0 : index
    %c0_23 = arith.constant 0 : index
    %c0_24 = arith.constant 0 : index
    %19 = vector.load %arg3[%c0_20, %c0_21, %c0_22, %c0_23, %c0_24] : memref<1x3x3x128x128xbf16, #tpu.memory_space<vmem>>, vector<1x1x1x128x128xbf16>
    %20 = vector.shape_cast %19 : vector<1x1x1x128x128xbf16> to vector<128x128xbf16>
    %cst = arith.constant dense<0.000000e+00> : vector<128x128xf32>
    %21 = tpu.matmul %18, %20, %cst {dimension_numbers = #tpu.dot_dimension_numbers<[1], [0], [0], [1], [0, 0, 1, 1], [], []>} : vector<128x128xbf16>, vector<128x128xbf16>, vector<128x128xf32> -> vector<128x128xf32>
    %22 = arith.addf %14, %21 : vector<128x128xf32>
    %23 = vector.extract_strided_slice %17 {offsets = [16, 0], sizes = [128, 128], strides = [1, 1]} : vector<160x128xbf16> to vector<128x128xbf16>
    %c0_25 = arith.constant 0 : index
    %c1_26 = arith.constant 1 : index
    %c0_27 = arith.constant 0 : index
    %c0_28 = arith.constant 0 : index
    %c0_29 = arith.constant 0 : index
    %24 = vector.load %arg3[%c0_25, %c1_26, %c0_27, %c0_28, %c0_29] : memref<1x3x3x128x128xbf16, #tpu.memory_space<vmem>>, vector<1x1x1x128x128xbf16>
    %25 = vector.shape_cast %24 : vector<1x1x1x128x128xbf16> to vector<128x128xbf16>
    %cst_30 = arith.constant dense<0.000000e+00> : vector<128x128xf32>
    %26 = tpu.matmul %23, %25, %cst_30 {dimension_numbers = #tpu.dot_dimension_numbers<[1], [0], [0], [1], [0, 0, 1, 1], [], []>} : vector<128x128xbf16>, vector<128x128xbf16>, vector<128x128xf32> -> vector<128x128xf32>
    %27 = arith.addf %22, %26 : vector<128x128xf32>
    %28 = vector.extract_strided_slice %17 {offsets = [32, 0], sizes = [128, 128], strides = [1, 1]} : vector<160x128xbf16> to vector<128x128xbf16>
    %c0_31 = arith.constant 0 : index
    %c2_32 = arith.constant 2 : index
    %c0_33 = arith.constant 0 : index
    %c0_34 = arith.constant 0 : index
    %c0_35 = arith.constant 0 : index
    %29 = vector.load %arg3[%c0_31, %c2_32, %c0_33, %c0_34, %c0_35] : memref<1x3x3x128x128xbf16, #tpu.memory_space<vmem>>, vector<1x1x1x128x128xbf16>
    %30 = vector.shape_cast %29 : vector<1x1x1x128x128xbf16> to vector<128x128xbf16>
    %cst_36 = arith.constant dense<0.000000e+00> : vector<128x128xf32>
    %31 = tpu.matmul %28, %30, %cst_36 {dimension_numbers = #tpu.dot_dimension_numbers<[1], [0], [0], [1], [0, 0, 1, 1], [], []>} : vector<128x128xbf16>, vector<128x128xbf16>, vector<128x128xf32> -> vector<128x128xf32>
    %32 = arith.addf %27, %31 : vector<128x128xf32>
    %c1_37 = arith.constant 1 : index
    %c0_38 = arith.constant 0 : index
    %c0_39 = arith.constant 0 : index
    %c0_40 = arith.constant 0 : index
    %33 = vector.load %arg9[%c1_37, %c0_38, %c0_39, %c0_40] : memref<3x10x16x128xbf16, #tpu.memory_space<vmem>>, vector<1x10x16x128xbf16>
    %34 = vector.shape_cast %33 : vector<1x10x16x128xbf16> to vector<10x16x128xbf16>
    %35 = vector.shape_cast %34 : vector<10x16x128xbf16> to vector<160x128xbf16>
    %36 = vector.extract_strided_slice %35 {offsets = [0, 0], sizes = [128, 128], strides = [1, 1]} : vector<160x128xbf16> to vector<128x128xbf16>
    %c0_41 = arith.constant 0 : index
    %c0_42 = arith.constant 0 : index
    %c1_43 = arith.constant 1 : index
    %c0_44 = arith.constant 0 : index
    %c0_45 = arith.constant 0 : index
    %37 = vector.load %arg3[%c0_41, %c0_42, %c1_43, %c0_44, %c0_45] : memref<1x3x3x128x128xbf16, #tpu.memory_space<vmem>>, vector<1x1x1x128x128xbf16>
    %38 = vector.shape_cast %37 : vector<1x1x1x128x128xbf16> to vector<128x128xbf16>
    %cst_46 = arith.constant dense<0.000000e+00> : vector<128x128xf32>
    %39 = tpu.matmul %36, %38, %cst_46 {dimension_numbers = #tpu.dot_dimension_numbers<[1], [0], [0], [1], [0, 0, 1, 1], [], []>} : vector<128x128xbf16>, vector<128x128xbf16>, vector<128x128xf32> -> vector<128x128xf32>
    %40 = arith.addf %32, %39 : vector<128x128xf32>
    %41 = vector.extract_strided_slice %35 {offsets = [16, 0], sizes = [128, 128], strides = [1, 1]} : vector<160x128xbf16> to vector<128x128xbf16>
    %c0_47 = arith.constant 0 : index
    %c1_48 = arith.constant 1 : index
    %c1_49 = arith.constant 1 : index
    %c0_50 = arith.constant 0 : index
    %c0_51 = arith.constant 0 : index
    %42 = vector.load %arg3[%c0_47, %c1_48, %c1_49, %c0_50, %c0_51] : memref<1x3x3x128x128xbf16, #tpu.memory_space<vmem>>, vector<1x1x1x128x128xbf16>
    %43 = vector.shape_cast %42 : vector<1x1x1x128x128xbf16> to vector<128x128xbf16>
    %cst_52 = arith.constant dense<0.000000e+00> : vector<128x128xf32>
    %44 = tpu.matmul %41, %43, %cst_52 {dimension_numbers = #tpu.dot_dimension_numbers<[1], [0], [0], [1], [0, 0, 1, 1], [], []>} : vector<128x128xbf16>, vector<128x128xbf16>, vector<128x128xf32> -> vector<128x128xf32>
    %45 = arith.addf %40, %44 : vector<128x128xf32>
    %46 = vector.extract_strided_slice %35 {offsets = [32, 0], sizes = [128, 128], strides = [1, 1]} : vector<160x128xbf16> to vector<128x128xbf16>
    %c0_53 = arith.constant 0 : index
    %c2_54 = arith.constant 2 : index
    %c1_55 = arith.constant 1 : index
    %c0_56 = arith.constant 0 : index
    %c0_57 = arith.constant 0 : index
    %47 = vector.load %arg3[%c0_53, %c2_54, %c1_55, %c0_56, %c0_57] : memref<1x3x3x128x128xbf16, #tpu.memory_space<vmem>>, vector<1x1x1x128x128xbf16>
    %48 = vector.shape_cast %47 : vector<1x1x1x128x128xbf16> to vector<128x128xbf16>
    %cst_58 = arith.constant dense<0.000000e+00> : vector<128x128xf32>
    %49 = tpu.matmul %46, %48, %cst_58 {dimension_numbers = #tpu.dot_dimension_numbers<[1], [0], [0], [1], [0, 0, 1, 1], [], []>} : vector<128x128xbf16>, vector<128x128xbf16>, vector<128x128xf32> -> vector<128x128xf32>
    %50 = arith.addf %45, %49 : vector<128x128xf32>
    %c2_59 = arith.constant 2 : index
    %c0_60 = arith.constant 0 : index
    %c0_61 = arith.constant 0 : index
    %c0_62 = arith.constant 0 : index
    %51 = vector.load %arg9[%c2_59, %c0_60, %c0_61, %c0_62] : memref<3x10x16x128xbf16, #tpu.memory_space<vmem>>, vector<1x10x16x128xbf16>
    %52 = vector.shape_cast %51 : vector<1x10x16x128xbf16> to vector<10x16x128xbf16>
    %53 = vector.shape_cast %52 : vector<10x16x128xbf16> to vector<160x128xbf16>
    %54 = vector.extract_strided_slice %53 {offsets = [0, 0], sizes = [128, 128], strides = [1, 1]} : vector<160x128xbf16> to vector<128x128xbf16>
    %c0_63 = arith.constant 0 : index
    %c0_64 = arith.constant 0 : index
    %c2_65 = arith.constant 2 : index
    %c0_66 = arith.constant 0 : index
    %c0_67 = arith.constant 0 : index
    %55 = vector.load %arg3[%c0_63, %c0_64, %c2_65, %c0_66, %c0_67] : memref<1x3x3x128x128xbf16, #tpu.memory_space<vmem>>, vector<1x1x1x128x128xbf16>
    %56 = vector.shape_cast %55 : vector<1x1x1x128x128xbf16> to vector<128x128xbf16>
    %cst_68 = arith.constant dense<0.000000e+00> : vector<128x128xf32>
    %57 = tpu.matmul %54, %56, %cst_68 {dimension_numbers = #tpu.dot_dimension_numbers<[1], [0], [0], [1], [0, 0, 1, 1], [], []>} : vector<128x128xbf16>, vector<128x128xbf16>, vector<128x128xf32> -> vector<128x128xf32>
    %58 = arith.addf %50, %57 : vector<128x128xf32>
    %59 = vector.extract_strided_slice %53 {offsets = [16, 0], sizes = [128, 128], strides = [1, 1]} : vector<160x128xbf16> to vector<128x128xbf16>
    %c0_69 = arith.constant 0 : index
    %c1_70 = arith.constant 1 : index
    %c2_71 = arith.constant 2 : index
    %c0_72 = arith.constant 0 : index
    %c0_73 = arith.constant 0 : index
    %60 = vector.load %arg3[%c0_69, %c1_70, %c2_71, %c0_72, %c0_73] : memref<1x3x3x128x128xbf16, #tpu.memory_space<vmem>>, vector<1x1x1x128x128xbf16>
    %61 = vector.shape_cast %60 : vector<1x1x1x128x128xbf16> to vector<128x128xbf16>
    %cst_74 = arith.constant dense<0.000000e+00> : vector<128x128xf32>
    %62 = tpu.matmul %59, %61, %cst_74 {dimension_numbers = #tpu.dot_dimension_numbers<[1], [0], [0], [1], [0, 0, 1, 1], [], []>} : vector<128x128xbf16>, vector<128x128xbf16>, vector<128x128xf32> -> vector<128x128xf32>
    %63 = arith.addf %58, %62 : vector<128x128xf32>
    %64 = vector.extract_strided_slice %53 {offsets = [32, 0], sizes = [128, 128], strides = [1, 1]} : vector<160x128xbf16> to vector<128x128xbf16>
    %c0_75 = arith.constant 0 : index
    %c2_76 = arith.constant 2 : index
    %c2_77 = arith.constant 2 : index
    %c0_78 = arith.constant 0 : index
    %c0_79 = arith.constant 0 : index
    %65 = vector.load %arg3[%c0_75, %c2_76, %c2_77, %c0_78, %c0_79] : memref<1x3x3x128x128xbf16, #tpu.memory_space<vmem>>, vector<1x1x1x128x128xbf16>
    %66 = vector.shape_cast %65 : vector<1x1x1x128x128xbf16> to vector<128x128xbf16>
    %cst_80 = arith.constant dense<0.000000e+00> : vector<128x128xf32>
    %67 = tpu.matmul %64, %66, %cst_80 {dimension_numbers = #tpu.dot_dimension_numbers<[1], [0], [0], [1], [0, 0, 1, 1], [], []>} : vector<128x128xbf16>, vector<128x128xbf16>, vector<128x128xf32> -> vector<128x128xf32>
    %68 = arith.addf %63, %67 : vector<128x128xf32>
    %c1_i32 = arith.constant 1 : i32
    %69 = arith.cmpi slt, %arg1, %c1_i32 : i32
    %70 = arith.extui %69 : i1 to i32
    %c0_i32_81 = arith.constant 0 : i32
    %71 = arith.cmpi ne, %70, %c0_i32_81 : i32
    scf.if %71 {
      %c0_84 = arith.constant 0 : index
      %c0_85 = arith.constant 0 : index
      %75 = vector.load %arg10[%c0_84, %c0_85] : memref<128x128xf32, #tpu.memory_space<vmem>>, vector<128x128xf32>
      tpu.vector_store %arg10[%c0_84, %c0_85], %68 {strides = array<i32>} : memref<128x128xf32, #tpu.memory_space<vmem>>, vector<128x128xf32>,
    } else {
    }
    %c1_i32_82 = arith.constant 1 : i32
    %72 = arith.cmpi eq, %arg1, %c1_i32_82 : i32
    %73 = arith.extui %72 : i1 to i32
    %c0_i32_83 = arith.constant 0 : i32
    %74 = arith.cmpi ne, %73, %c0_i32_83 : i32
    scf.if %74 {
      %c0_84 = arith.constant 0 : index
      %c0_85 = arith.constant 0 : index
      %75 = vector.load %arg4[%c0_84, %c0_85] : memref<1x128xf32, #tpu.memory_space<vmem>>, vector<1x128xf32>
      %76 = vector.broadcast %75 : vector<1x128xf32> to vector<128x128xf32>
      %77 = arith.mulf %68, %76 : vector<128x128xf32>
      %c0_86 = arith.constant 0 : index
      %c0_87 = arith.constant 0 : index
      %78 = vector.load %arg5[%c0_86, %c0_87] : memref<1x128xf32, #tpu.memory_space<vmem>>, vector<1x128xf32>
      %79 = vector.broadcast %78 : vector<1x128xf32> to vector<128x128xf32>
      %80 = arith.addf %77, %79 : vector<128x128xf32>
      %cst_88 = arith.constant 0.000000e+00 : f32
      %81 = vector.broadcast %cst_88 : f32 to vector<128x128xf32>
      %82 = arith.maximumf %80, %81 : vector<128x128xf32>
      %83 = arith.truncf %82 : vector<128x128xf32> to vector<128x128xbf16>
      %c0_89 = arith.constant 0 : index
      %c0_90 = arith.constant 0 : index
      %84 = vector.load %arg6[%c0_89, %c0_90] : memref<128x128xbf16, #tpu.memory_space<vmem>>, vector<128x128xbf16>
      %cst_91 = arith.constant dense<0.000000e+00> : vector<128x128xf32>
      %85 = tpu.matmul %83, %84, %cst_91 {dimension_numbers = #tpu.dot_dimension_numbers<[1], [0], [0], [1], [0, 0, 1, 1], [], []>} : vector<128x128xbf16>, vector<128x128xbf16>, vector<128x128xf32> -> vector<128x128xf32>
      %c0_92 = arith.constant 0 : index
      %c0_93 = arith.constant 0 : index
      %86 = vector.load %arg7[%c0_92, %c0_93] : memref<1x128xf32, #tpu.memory_space<vmem>>, vector<1x128xf32>
      %87 = vector.broadcast %86 : vector<1x128xf32> to vector<128x128xf32>
      %88 = arith.addf %85, %87 : vector<128x128xf32>
      %cst_94 = arith.constant dense<0xFF800000> : vector<128xf32>
      %89 = vector.multi_reduction <maximumf>, %88, %cst_94 [1] : vector<128x128xf32> to vector<128xf32>
      %90 = vector.shape_cast %89 : vector<128xf32> to vector<128x1xf32>
      %91 = vector.broadcast %90 : vector<128x1xf32> to vector<128x128xf32>
      %92 = arith.subf %88, %91 : vector<128x128xf32>
      %93 = math.exp %92 : vector<128x128xf32>
      %cst_95 = arith.constant dense<0.000000e+00> : vector<128xf32>
      %94 = vector.multi_reduction <add>, %93, %cst_95 [1] : vector<128x128xf32> to vector<128xf32>
      %95 = vector.shape_cast %94 : vector<128xf32> to vector<128x1xf32>
      %96 = math.log %95 : vector<128x1xf32>
      %97 = vector.broadcast %96 : vector<128x1xf32> to vector<128x128xf32>
      %98 = arith.subf %92, %97 : vector<128x128xf32>
      %99 = vector.shape_cast %98 : vector<128x128xf32> to vector<1x8x16x128xf32>
      %c0_96 = arith.constant 0 : index
      %c0_97 = arith.constant 0 : index
      %c0_98 = arith.constant 0 : index
      %c0_99 = arith.constant 0 : index
      %100 = vector.load %arg8[%c0_96, %c0_97, %c0_98, %c0_99] : memref<1x8x16x128xf32, #tpu.memory_space<vmem>>, vector<1x8x16x128xf32>
      tpu.vector_store %arg8[%c0_96, %c0_97, %c0_98, %c0_99], %99 {strides = array<i32>} : memref<1x8x16x128xf32, #tpu.memory_space<vmem>>, vector<1x8x16x128xf32>,
    } else {
    }
    return
  }
  func.func @transform_0(%arg0: i32, %arg1: i32) -> (i32, i32, i32, i32) {
    %c0_i32 = arith.constant 0 : i32
    %c0_i32_0 = arith.constant 0 : i32
    %c0_i32_1 = arith.constant 0 : i32
    return %arg0, %c0_i32, %c0_i32_0, %arg1 : i32, i32, i32, i32
  }
  func.func @transform_1(%arg0: i32, %arg1: i32) -> (i32, i32, i32, i32, i32) {
    %c0_i32 = arith.constant 0 : i32
    %c0_i32_0 = arith.constant 0 : i32
    %c0_i32_1 = arith.constant 0 : i32
    %c0_i32_2 = arith.constant 0 : i32
    %c0_i32_3 = arith.constant 0 : i32
    return %arg1, %c0_i32, %c0_i32_0, %c0_i32_1, %c0_i32_2 : i32, i32, i32, i32, i32
  }
  func.func @transform_2(%arg0: i32, %arg1: i32) -> (i32, i32) {
    %c0_i32 = arith.constant 0 : i32
    %c0_i32_0 = arith.constant 0 : i32
    %c0_i32_1 = arith.constant 0 : i32
    return %c0_i32, %c0_i32_0 : i32, i32
  }
  func.func @transform_3(%arg0: i32, %arg1: i32) -> (i32, i32) {
    %c0_i32 = arith.constant 0 : i32
    %c0_i32_0 = arith.constant 0 : i32
    %c0_i32_1 = arith.constant 0 : i32
    return %c0_i32, %c0_i32_0 : i32, i32
  }
  func.func @transform_4(%arg0: i32, %arg1: i32) -> (i32, i32) {
    %c0_i32 = arith.constant 0 : i32
    %c0_i32_0 = arith.constant 0 : i32
    %c0_i32_1 = arith.constant 0 : i32
    return %c0_i32, %c0_i32_0 : i32, i32
  }
  func.func @transform_5(%arg0: i32, %arg1: i32) -> (i32, i32) {
    %c0_i32 = arith.constant 0 : i32
    %c0_i32_0 = arith.constant 0 : i32
    %c0_i32_1 = arith.constant 0 : i32
    return %c0_i32, %c0_i32_0 : i32, i32
  }
  func.func @transform_6(%arg0: i32, %arg1: i32) -> (i32, i32, i32, i32) {
    %c0_i32 = arith.constant 0 : i32
    %c0_i32_0 = arith.constant 0 : i32
    %c0_i32_1 = arith.constant 0 : i32
    %c0_i32_2 = arith.constant 0 : i32
    return %arg0, %c0_i32, %c0_i32_0, %c0_i32_1 : i32, i32, i32, i32
  }
}

</mosaic_0001>

<llo_original>
// kernel: tpu_custom_call.1
$region0: #{tpu_custom_call.1}
  #allocation0 [shape = 'u32[]', space=smem, size = 0x4, offset = 0x4, fixed_abs, tag = 'smem constant byte address 0x4 - core index']
  #allocation1 [shape = 'u32[72,128]{1,0:T(1,128)}', space=vmem, size = 0x9000, scoped, tag = 'internal scratch']
  #allocation2 [shape = 'bf16[3,10,16,128]{3,2,1,0:T(8,128)(2,1)}', space=vmem, size = 0x1e000, scoped, tag = 'scratch operand']
  #allocation3 [shape = 'f32[128,128]{1,0:T(8,128)}', space=vmem, size = 0x10000, scoped, tag = 'scratch operand']
  %s0 = inlined_call_operand.hbm [shape: bf16[2,8,8,256], index: 0, kind: input, shape index: {}]
  %s1 = inlined_call_operand.hbm [shape: bf16[2,3,3,128,128], index: 1, kind: input, shape index: {}]
  %s2 = inlined_call_operand.vmem [shape: f32[1,128], index: 2, kind: input, shape index: {}]
  %s3 = inlined_call_operand.vmem [shape: f32[1,128], index: 3, kind: input, shape index: {}]
  %s4 = inlined_call_operand.hbm [shape: bf16[128,128], index: 4, kind: input, shape index: {}]
  %s5 = inlined_call_operand.vmem [shape: f32[1,128], index: 5, kind: input, shape index: {}]
  %s6 = inlined_call_operand.hbm [shape: f32[2,8,16,128], index: 6, kind: output, shape index: {}]
  %s7 = sld [smem:[#allocation0]]
  $region81: #{tpu_custom_call.1} parent=0
    _
  %s9 = ssub.s32 1, %s7
  %s10 = scalar_select 0, %s9, %s7
  $region1: #{tpu_custom_call.1} parent=0
    #allocation4 [shape = 'u8[32768]{0}', space=vmem, size = 0x8000, scoped, tag = 'input window, operand 0']
    #allocation5 [shape = 's32[2]{0}', space=sflag, size = 0x8, scoped, tag = 'scoped memory for tpu_custom_call.1']
    #allocation6 [shape = 's32[2]{0}', space=sflag, size = 0x8, scoped, tag = 'scoped memory for tpu_custom_call.1']
    #allocation7 [shape = 'u8[589824]{0}', space=vmem, size = 0x90000, scoped, tag = 'input window, operand 1']
    #allocation8 [shape = 's32[2]{0}', space=sflag, size = 0x8, scoped, tag = 'scoped memory for tpu_custom_call.1']
    #allocation9 [shape = 'u8[32768]{0}', space=vmem, size = 0x8000, scoped, tag = 'input window, operand 4, single buffered']
    #allocation10 [shape = 'u8[131072]{0}', space=vmem, size = 0x20000, scoped, tag = 'output window, operand 0']
    %11 = vsyncpa [#allocation5], 0
    %s12 = scalar_lea.sflag [#allocation5], 1
    %13 = vsyncpa %s12, 0
    %14 = vsyncpa [#allocation8], 0
    %s15 = scalar_lea.sflag [#allocation8], 1
    %16 = vsyncpa %s15, 0
    %17 = vsyncpa [#allocation6], 0
    %s18 = scalar_lea.sflag [#allocation6], 1
    %19 = vsyncpa %s18, 0
    loop: start=0, step=1, limit=6
    $region2: #{tpu_custom_call.1} parent=1 // loop_pre_header
      _
    $region3: #{tpu_custom_call.1} parent=1 // loop_header
      %s21 = sphi 0, %s25
      %p22 = scmp.ge.s32.totalorder %s21, 6
      %s28 = sphi 0, %s40
      %s29 = sphi 0, %s36
      %s30 = sphi 0, %s28
      %s31 = sphi 0, %s29
      %s32 = sphi 0, %s30
      %s33 = sphi 0, %s31
      %s45 = sphi 0, %s47
      %s48 = sphi 0, %s45
      %s49 = sphi 0, %s48
      %s65 = sphi 0, %s49
      %s71 = sphi 0, %s73
      %s74 = sphi 0, %s71
      %s75 = sphi 0, %s74
      %s91 = sphi 0, %s75
      %s95 = sphi 0, %s95
      %s97 = sphi 0, %s95
      %s98 = sphi 0, %s97
      %s112 = sphi 0, %s98
      %s116 = sphi 0, %s116
      %s118 = sphi 0, %s116
      %s119 = sphi 0, %s118
      %s133 = sphi 0, %s119
      %s137 = sphi 0, %s137
      %s139 = sphi 0, %s137
      %s140 = sphi 0, %s139
      %s154 = sphi 0, %s140
      %s158 = sphi 0, %s158
      %s160 = sphi 0, %s158
      %s161 = sphi 0, %s160
      %s175 = sphi 0, %s161
      %s181 = sphi 0, %s183
      %s184 = sphi 0, %s181
      %s185 = sphi 0, %s184
      %s201 = sphi 0, %s185
    $region4: #{tpu_custom_call.1} parent=1 // loop_header_branch
      %24 = sbr.rel (%p22) target = $region8
    $region5: #{tpu_custom_call.1} parent=1 // loop_body
      %s26 = ssub.s32 %s21, 1
      %s27 = ssub.s32 %s21, 2
      %s34 = sadd.s32 1, %s29
      %p35 = scmp.ge.s32.totalorder %s34, 2
      %s36 = scalar_select %p35, 0, %s34
      %s37 = sadd.s32 1, %s28
      %s38 = scalar_select %p35, %s37, %s28
      %p39 = scmp.ge.s32.totalorder %s38, 2
      %s40 = scalar_select %p39, 0, %s38
      %s41 = ssub.s32 %s28, %s40
      %s42 = ssub.s32 %s29, %s36
      %s43 = sor.u32 %s41, %s42
      %p44 = scmp.eq.s32.totalorder %s43, 0
      %s46 = sadd.s32 %s45, 1
      %s47 = scalar_select %p44, %s45, %s46
      %p50 = pneg %p44
      %p51 = scmp.eq.s32.totalorder %s21, 3
      %p52 = por %p50, %p51
      %p53 = scmp.ne.s32.totalorder %s45, %s48
      %p54 = scmp.eq.s32.totalorder %s21, 0
      %p55 = por %p53, %p54
      %p56 = scmp.ne.s32.totalorder %s45, %s48
      %p57 = scmp.eq.s32.totalorder %s26, 3
      %p58 = por %p56, %p57
      %p59 = scmp.ne.s32.totalorder %s48, %s49
      %p60 = scmp.eq.s32.totalorder %s26, 0
      %p61 = por %p59, %p60
      %p62 = scmp.ne.s32.totalorder %s48, %s49
      %p63 = scmp.eq.s32.totalorder %s27, 3
      %p64 = por %p62, %p63
      %p66 = scmp.ne.s32.totalorder %s49, %s65
      %p67 = scmp.eq.s32.totalorder %s27, 0
      %p68 = por %p66, %p67
      %s69 = ssub.s32 %s29, %s36
      %p70 = scmp.eq.s32.totalorder %s69, 0
      %s72 = sadd.s32 %s71, 1
      %s73 = scalar_select %p70, %s71, %s72
      %p76 = pneg %p70
      %p77 = scmp.eq.s32.totalorder %s21, 3
      %p78 = por %p76, %p77
      %p79 = scmp.ne.s32.totalorder %s71, %s74
      %p80 = scmp.eq.s32.totalorder %s21, 0
      %p81 = por %p79, %p80
      %p82 = scmp.ne.s32.totalorder %s71, %s74
      %p83 = scmp.eq.s32.totalorder %s26, 3
      %p84 = por %p82, %p83
      %p85 = scmp.ne.s32.totalorder %s74, %s75
      %p86 = scmp.eq.s32.totalorder %s26, 0
      %p87 = por %p85, %p86
      %p88 = scmp.ne.s32.totalorder %s74, %s75
      %p89 = scmp.eq.s32.totalorder %s27, 3
      %p90 = por %p88, %p89
      %p92 = scmp.ne.s32.totalorder %s75, %s91
      %p93 = scmp.eq.s32.totalorder %s27, 0
      %p94 = por %p92, %p93
      %s96 = sadd.s32 %s95, 1
      %p99 = scmp.eq.s32.totalorder %s21, 3
      %p100 = scmp.ne.s32.totalorder %s95, %s97
      %p101 = scmp.eq.s32.totalorder %s21, 0
      %p102 = por %p100, %p101
      %p103 = scmp.ne.s32.totalorder %s95, %s97
      %p104 = scmp.eq.s32.totalorder %s26, 3
      %p105 = por %p103, %p104
      %p106 = scmp.ne.s32.totalorder %s97, %s98
      %p107 = scmp.eq.s32.totalorder %s26, 0
      %p108 = por %p106, %p107
      %p109 = scmp.ne.s32.totalorder %s97, %s98
      %p110 = scmp.eq.s32.totalorder %s27, 3
      %p111 = por %p109, %p110
      %p113 = scmp.ne.s32.totalorder %s98, %s112
      %p114 = scmp.eq.s32.totalorder %s27, 0
      %p115 = por %p113, %p114
      %s117 = sadd.s32 %s116, 1
      %p120 = scmp.eq.s32.totalorder %s21, 3
      %p121 = scmp.ne.s32.totalorder %s116, %s118
      %p122 = scmp.eq.s32.totalorder %s21, 0
      %p123 = por %p121, %p122
      %p124 = scmp.ne.s32.totalorder %s116, %s118
      %p125 = scmp.eq.s32.totalorder %s26, 3
      %p126 = por %p124, %p125
      %p127 = scmp.ne.s32.totalorder %s118, %s119
      %p128 = scmp.eq.s32.totalorder %s26, 0
      %p129 = por %p127, %p128
      %p130 = scmp.ne.s32.totalorder %s118, %s119
      %p131 = scmp.eq.s32.totalorder %s27, 3
      %p132 = por %p130, %p131
      %p134 = scmp.ne.s32.totalorder %s119, %s133
      %p135 = scmp.eq.s32.totalorder %s27, 0
      %p136 = por %p134, %p135
      %s138 = sadd.s32 %s137, 1
      %p141 = scmp.eq.s32.totalorder %s21, 3
      %p142 = scmp.ne.s32.totalorder %s137, %s139
      %p143 = scmp.eq.s32.totalorder %s21, 0
      %p144 = por %p142, %p143
      %p145 = scmp.ne.s32.totalorder %s137, %s139
      %p146 = scmp.eq.s32.totalorder %s26, 3
      %p147 = por %p145, %p146
      %p148 = scmp.ne.s32.totalorder %s139, %s140
      %p149 = scmp.eq.s32.totalorder %s26, 0
      %p150 = por %p148, %p149
      %p151 = scmp.ne.s32.totalorder %s139, %s140
      %p152 = scmp.eq.s32.totalorder %s27, 3
      %p153 = por %p151, %p152
      %p155 = scmp.ne.s32.totalorder %s140, %s154
      %p156 = scmp.eq.s32.totalorder %s27, 0
      %p157 = por %p155, %p156
      %s159 = sadd.s32 %s158, 1
      %p162 = scmp.eq.s32.totalorder %s21, 3
      %p163 = scmp.ne.s32.totalorder %s158, %s160
      %p164 = scmp.eq.s32.totalorder %s21, 0
      %p165 = por %p163, %p164
      %p166 = scmp.ne.s32.totalorder %s158, %s160
      %p167 = scmp.eq.s32.totalorder %s26, 3
      %p168 = por %p166, %p167
      %p169 = scmp.ne.s32.totalorder %s160, %s161
      %p170 = scmp.eq.s32.totalorder %s26, 0
      %p171 = por %p169, %p170
      %p172 = scmp.ne.s32.totalorder %s160, %s161
      %p173 = scmp.eq.s32.totalorder %s27, 3
      %p174 = por %p172, %p173
      %p176 = scmp.ne.s32.totalorder %s161, %s175
      %p177 = scmp.eq.s32.totalorder %s27, 0
      %p178 = por %p176, %p177
      %s179 = ssub.s32 %s28, %s40
      %p180 = scmp.eq.s32.totalorder %s179, 0
      %s182 = sadd.s32 %s181, 1
      %s183 = scalar_select %p180, %s181, %s182
      %p186 = pneg %p180
      %p187 = scmp.eq.s32.totalorder %s21, 3
      %p188 = por %p186, %p187
      %p189 = scmp.ne.s32.totalorder %s181, %s184
      %p190 = scmp.eq.s32.totalorder %s21, 0
      %p191 = por %p189, %p190
      %p192 = scmp.ne.s32.totalorder %s181, %s184
      %p193 = scmp.eq.s32.totalorder %s26, 3
      %p194 = por %p192, %p193
      %p195 = scmp.ne.s32.totalorder %s184, %s185
      %p196 = scmp.eq.s32.totalorder %s26, 0
      %p197 = por %p195, %p196
      %p198 = scmp.ne.s32.totalorder %s184, %s185
      %p199 = scmp.eq.s32.totalorder %s27, 3
      %p200 = por %p198, %p199
      %p202 = scmp.ne.s32.totalorder %s185, %s201
      %p203 = scmp.eq.s32.totalorder %s27, 0
      %p204 = por %p202, %p203
      %p205 = scmp.le.s32.totalorder 1, %s21
      %p206 = scmp.lt.s32.totalorder %s21, 5
      %p207 = pnand %p205, %p206
      %p208 = pneg %p207
      // Predicated region
      $region9: #{tpu_custom_call.1} parent=5 // pred_check
        _
      $region10: #{tpu_custom_call.1} parent=5 // pred_check_branch
        %210 = sbr.rel (%p207) target = $region12
      $region11: #{tpu_custom_call.1} parent=5 // pred_region
        %s211 = ssub.s32 %s21, 1
        // Predicated region
        $region13: #{tpu_custom_call.1} parent=11 // pred_check
          %p212 = pneg %p108
        $region14: #{tpu_custom_call.1} parent=11 // pred_check_branch
          %214 = sbr.rel (%p212) target = $region16
        $region15: #{tpu_custom_call.1} parent=11 // pred_region
          _
        $region16: #{tpu_custom_call.1} parent=11 // pred_fallthru
          _
        // Predicated region
        $region17: #{tpu_custom_call.1} parent=11 // pred_check
          %p215 = pneg %p129
        $region18: #{tpu_custom_call.1} parent=11 // pred_check_branch
          %217 = sbr.rel (%p215) target = $region20
        $region19: #{tpu_custom_call.1} parent=11 // pred_region
          _
        $region20: #{tpu_custom_call.1} parent=11 // pred_fallthru
          _
        // Predicated region
        $region21: #{tpu_custom_call.1} parent=11 // pred_check
          %p218 = pneg %p150
        $region22: #{tpu_custom_call.1} parent=11 // pred_check_branch
          %220 = sbr.rel (%p218) target = $region24
        $region23: #{tpu_custom_call.1} parent=11 // pred_region
          %222 = vsyncadd [#allocation8], 0
          %s223 = sshll.u32 %s4, 4
          %s224 = int_to_ptr.hbm [resolvable:$true] %s223
          %s225 = sshll.u32 [#allocation9], 4
          %s226 = int_to_ptr.vmem [resolvable:$true] %s225
          %231 = dma.hbm_to_vmem [thread:$0]  %s224, 1024, %s226, [#allocation8], 64, 64, 4
        $region24: #{tpu_custom_call.1} parent=11 // pred_fallthru
          _
        // Predicated region
        $region25: #{tpu_custom_call.1} parent=11 // pred_check
          %p232 = pneg %p171
        $region26: #{tpu_custom_call.1} parent=11 // pred_check_branch
          %234 = sbr.rel (%p232) target = $region28
        $region27: #{tpu_custom_call.1} parent=11 // pred_region
          _
        $region28: #{tpu_custom_call.1} parent=11 // pred_fallthru
          _
      $region12: #{tpu_custom_call.1} parent=5 // pred_fallthru
        _
      %p235 = scmp.lt.s32.totalorder %s21, 4
      // Predicated region
      $region29: #{tpu_custom_call.1} parent=5 // pred_check
        %p236 = pneg %p235
      $region30: #{tpu_custom_call.1} parent=5 // pred_check_branch
        %238 = sbr.rel (%p236) target = $region32
      $region31: #{tpu_custom_call.1} parent=5 // pred_region
        // Predicated region
        $region33: #{tpu_custom_call.1} parent=31 // pred_check
          %p239 = pneg %p55
        $region34: #{tpu_custom_call.1} parent=31 // pred_check_branch
          %241 = sbr.rel (%p239) target = $region36
        $region35: #{tpu_custom_call.1} parent=31 // pred_region
          %s242 = sand.u32 %s45, 1
          %s243 = scalar_lea.sflag [#allocation5], %s242
          %s244 = sand.u32 %s45, 1
          %s245 = smul.addr %s244, 32
          %s246 = scalar_lea.vmem [#allocation4], %s245
          %248 = vsyncadd %s243, 0
          %s249 = smul.addr %s28, 16
          %s250 = sadd.s32 %s29, %s249
          %s251 = smul.addr %s250, 4
          %s252 = scalar_lea.hbm %s0, %s251
          %s253 = sshll.u32 %s252, 4
          %s254 = int_to_ptr.hbm [resolvable:$true] %s253
          %s255 = sshll.u32 %s246, 4
          %s256 = int_to_ptr.vmem [resolvable:$true] %s255
          %261 = dma.hbm_to_vmem [thread:$0]  %s254, 512, %s256, %s243, 128, 64, 4
        $region36: #{tpu_custom_call.1} parent=31 // pred_fallthru
          _
        // Predicated region
        $region37: #{tpu_custom_call.1} parent=31 // pred_check
          %p262 = pneg %p81
        $region38: #{tpu_custom_call.1} parent=31 // pred_check_branch
          %264 = sbr.rel (%p262) target = $region40
        $region39: #{tpu_custom_call.1} parent=31 // pred_region
          %s265 = sand.u32 %s21, 1
          %s266 = scalar_lea.sflag [#allocation8], %s265
          %s267 = sand.u32 %s71, 1
          %s268 = smul.addr %s267, 576
          %s269 = scalar_lea.vmem [#allocation7], %s268
          %271 = vsyncadd %s266, 0
          %s272 = smul.addr %s29, 144
          %s273 = smul.addr %s272, 4
          %s274 = scalar_lea.hbm %s1, %s273
          %s275 = sshll.u32 %s274, 4
          %s276 = int_to_ptr.hbm [resolvable:$true] %s275
          %s277 = sshll.u32 %s269, 4
          %s278 = int_to_ptr.vmem [resolvable:$true] %s277
          %283 = dma.hbm_to_vmem [thread:$0]  %s276, 9216, %s278, %s266, 64, 64, 4
        $region40: #{tpu_custom_call.1} parent=31 // pred_fallthru
          _
      $region32: #{tpu_custom_call.1} parent=5 // pred_fallthru
        _
      %p284 = scmp.le.s32.totalorder 1, %s21
      %p285 = scmp.lt.s32.totalorder %s21, 5
      %p286 = pnand %p284, %p285
      %p287 = pneg %p286
      // Predicated region
      $region41: #{tpu_custom_call.1} parent=5 // pred_check
        _
      $region42: #{tpu_custom_call.1} parent=5 // pred_check_branch
        %289 = sbr.rel (%p286) target = $region44
      $region43: #{tpu_custom_call.1} parent=5 // pred_region
        %s290 = ssub.s32 %s21, 1
        %s291 = sand.u32 %s48, 1
        %s292 = scalar_lea.sflag [#allocation5], %s291
        %s293 = sand.u32 %s48, 1
        %s294 = smul.addr %s293, 32
        %s295 = scalar_lea.vmem [#allocation4], %s294
        // Predicated region
        $region45: #{tpu_custom_call.1} parent=43 // pred_check
          %p296 = pneg %p61
        $region46: #{tpu_custom_call.1} parent=43 // pred_check_branch
          %298 = sbr.rel (%p296) target = $region48
        $region47: #{tpu_custom_call.1} parent=43 // pred_region
          %300 = dma.done %s292, 512
        $region48: #{tpu_custom_call.1} parent=43 // pred_fallthru
          _
        %s301 = sand.u32 %s26, 1
        %s302 = scalar_lea.sflag [#allocation8], %s301
        %s303 = sand.u32 %s74, 1
        %s304 = smul.addr %s303, 576
        %s305 = scalar_lea.vmem [#allocation7], %s304
        // Predicated region
        $region49: #{tpu_custom_call.1} parent=43 // pred_check
          %p306 = pneg %p87
        $region50: #{tpu_custom_call.1} parent=43 // pred_check_branch
          %308 = sbr.rel (%p306) target = $region52
        $region51: #{tpu_custom_call.1} parent=43 // pred_region
          %310 = dma.done %s302, 9216
        $region52: #{tpu_custom_call.1} parent=43 // pred_fallthru
          _
        // Predicated region
        $region53: #{tpu_custom_call.1} parent=43 // pred_check
          %p311 = pneg %p150
        $region54: #{tpu_custom_call.1} parent=43 // pred_check_branch
          %313 = sbr.rel (%p311) target = $region56
        $region55: #{tpu_custom_call.1} parent=43 // pred_region
          %315 = dma.done [#allocation8], 1024
        $region56: #{tpu_custom_call.1} parent=43 // pred_fallthru
          _
        %s316 = sand.u32 %s48, 1
        %s317 = scalar_lea.sflag [#allocation5], %s316
        %s318 = sand.u32 %s48, 1
        %s319 = smul.addr %s318, 32
        %s320 = scalar_lea.vmem [#allocation4], %s319
        %p321 = pneg %p61
        %p322 = pneg %p58
        %s323 = sand.u32 %s26, 1
        %s324 = scalar_lea.sflag [#allocation8], %s323
        %s325 = sand.u32 %s74, 1
        %s326 = smul.addr %s325, 576
        %s327 = scalar_lea.vmem [#allocation7], %s326
        %p328 = pneg %p87
        %p329 = pneg %p84
        %p330 = pneg %p108
        %p331 = pneg %p105
        %p332 = pneg %p129
        %p333 = pneg %p126
        %p334 = pneg %p150
        %p335 = pneg %p147
        %p336 = pneg %p171
        %p337 = pneg %p168
        %p338 = pneg %p197
        %p339 = pneg %p194
        %s340 = sand.u32 %s184, 1
        %s341 = scalar_lea.sflag [#allocation6], %s340
        %s342 = sand.u32 %s184, 1
        %s343 = smul.addr %s342, 128
        %s344 = scalar_lea.vmem [#allocation10], %s343
        %p346 = scmp.eq.s32.totalorder %s31, 0
        // Predicated region
        $region57: #{tpu_custom_call.1} parent=43 // pred_check
          %p347 = pneg %p346
        $region58: #{tpu_custom_call.1} parent=43 // pred_check_branch
          %349 = sbr.rel (%p347) target = $region60
        $region59: #{tpu_custom_call.1} parent=43 // pred_region
          %350 = vst [vmem:[#allocation3] sm:$0xff] 0.0
          %351 = vst [vmem:[#allocation3 + $0x8] sm:$0xff] 0.0
          %352 = vst [vmem:[#allocation3 + $0x10] sm:$0xff] 0.0
          %353 = vst [vmem:[#allocation3 + $0x18] sm:$0xff] 0.0
          %354 = vst [vmem:[#allocation3 + $0x20] sm:$0xff] 0.0
          %355 = vst [vmem:[#allocation3 + $0x28] sm:$0xff] 0.0
          %356 = vst [vmem:[#allocation3 + $0x30] sm:$0xff] 0.0
          %357 = vst [vmem:[#allocation3 + $0x38] sm:$0xff] 0.0
          %358 = vst [vmem:[#allocation3 + $0x40] sm:$0xff] 0.0
          %359 = vst [vmem:[#allocation3 + $0x48] sm:$0xff] 0.0
          %360 = vst [vmem:[#allocation3 + $0x50] sm:$0xff] 0.0
          %361 = vst [vmem:[#allocation3 + $0x58] sm:$0xff] 0.0
          %362 = vst [vmem:[#allocation3 + $0x60] sm:$0xff] 0.0
          %363 = vst [vmem:[#allocation3 + $0x68] sm:$0xff] 0.0
          %364 = vst [vmem:[#allocation3 + $0x70] sm:$0xff] 0.0
          %365 = vst [vmem:[#allocation3 + $0x78] sm:$0xff] 0.0
          %366 = vst [vmem:[#allocation2] sm:$0xf] 0
          %367 = vst [vmem:[#allocation2 + $0x4] sm:$0xf] 0
          %s368 = scalar_lea.vmem [#allocation2], 72
          %369 = vst [vmem:[%s368] sm:$0xf] 0
          %370 = vst [vmem:[%s368 + $0x4] sm:$0xf] 0
          %371 = vst [vmem:[#allocation2] sm:$0x1] 0
          %372 = vst [vmem:[#allocation2 + $0x8] sm:$0x1] 0
          %373 = vst [vmem:[#allocation2 + $0x10] sm:$0x1] 0
          %374 = vst [vmem:[#allocation2 + $0x18] sm:$0x1] 0
          %375 = vst [vmem:[#allocation2 + $0x20] sm:$0x1] 0
          %376 = vst [vmem:[#allocation2 + $0x28] sm:$0x1] 0
          %377 = vst [vmem:[#allocation2 + $0x30] sm:$0x1] 0
          %378 = vst [vmem:[#allocation2 + $0x38] sm:$0x1] 0
          %379 = vst [vmem:[#allocation2 + $0x40] sm:$0x1] 0
          %380 = vst [vmem:[#allocation2 + $0x48] sm:$0x1] 0
          %381 = vst [vmem:[#allocation2 + $0x4] sm:$0xf] 0
          %382 = vst [vmem:[#allocation2 + $0xc] sm:$0xf] 0
          %383 = vst [vmem:[#allocation2 + $0x14] sm:$0xf] 0
          %384 = vst [vmem:[#allocation2 + $0x1c] sm:$0xf] 0
          %385 = vst [vmem:[#allocation2 + $0x24] sm:$0xf] 0
          %386 = vst [vmem:[#allocation2 + $0x2c] sm:$0xf] 0
          %387 = vst [vmem:[#allocation2 + $0x34] sm:$0xf] 0
          %388 = vst [vmem:[#allocation2 + $0x3c] sm:$0xf] 0
          %389 = vst [vmem:[#allocation2 + $0x44] sm:$0xf] 0
          %390 = vst [vmem:[#allocation2 + $0x4c] sm:$0xf] 0
          %s391 = scalar_lea.vmem [#allocation2], 80
          %392 = vst [vmem:[%s391] sm:$0xf] 0
          %393 = vst [vmem:[%s391 + $0x4] sm:$0xf] 0
          %s394 = scalar_lea.vmem [#allocation2], 152
          %395 = vst [vmem:[%s394] sm:$0xf] 0
          %396 = vst [vmem:[%s394 + $0x4] sm:$0xf] 0
          %397 = vst [vmem:[%s391] sm:$0x1] 0
          %398 = vst [vmem:[%s391 + $0x8] sm:$0x1] 0
          %399 = vst [vmem:[%s391 + $0x10] sm:$0x1] 0
          %400 = vst [vmem:[%s391 + $0x18] sm:$0x1] 0
          %401 = vst [vmem:[%s391 + $0x20] sm:$0x1] 0
          %402 = vst [vmem:[%s391 + $0x28] sm:$0x1] 0
          %403 = vst [vmem:[%s391 + $0x30] sm:$0x1] 0
          %404 = vst [vmem:[%s391 + $0x38] sm:$0x1] 0
          %405 = vst [vmem:[%s391 + $0x40] sm:$0x1] 0
          %406 = vst [vmem:[%s391 + $0x48] sm:$0x1] 0
          %407 = vst [vmem:[%s391 + $0x4] sm:$0xf] 0
          %408 = vst [vmem:[%s391 + $0xc] sm:$0xf] 0
          %409 = vst [vmem:[%s391 + $0x14] sm:$0xf] 0
          %410 = vst [vmem:[%s391 + $0x1c] sm:$0xf] 0
          %411 = vst [vmem:[%s391 + $0x24] sm:$0xf] 0
          %412 = vst [vmem:[%s391 + $0x2c] sm:$0xf] 0
          %413 = vst [vmem:[%s391 + $0x34] sm:$0xf] 0
          %414 = vst [vmem:[%s391 + $0x3c] sm:$0xf] 0
          %415 = vst [vmem:[%s391 + $0x44] sm:$0xf] 0
          %416 = vst [vmem:[%s391 + $0x4c] sm:$0xf] 0
          %s417 = scalar_lea.vmem [#allocation2], 160
          %418 = vst [vmem:[%s417] sm:$0xf] 0
          %419 = vst [vmem:[%s417 + $0x4] sm:$0xf] 0
          %s420 = scalar_lea.vmem [#allocation2], 232
          %421 = vst [vmem:[%s420] sm:$0xf] 0
          %422 = vst [vmem:[%s420 + $0x4] sm:$0xf] 0
          %423 = vst [vmem:[%s417] sm:$0x1] 0
          %424 = vst [vmem:[%s417 + $0x8] sm:$0x1] 0
          %425 = vst [vmem:[%s417 + $0x10] sm:$0x1] 0
          %426 = vst [vmem:[%s417 + $0x18] sm:$0x1] 0
          %427 = vst [vmem:[%s417 + $0x20] sm:$0x1] 0
          %428 = vst [vmem:[%s417 + $0x28] sm:$0x1] 0
          %429 = vst [vmem:[%s417 + $0x30] sm:$0x1] 0
          %430 = vst [vmem:[%s417 + $0x38] sm:$0x1] 0
          %431 = vst [vmem:[%s417 + $0x40] sm:$0x1] 0
          %432 = vst [vmem:[%s417 + $0x48] sm:$0x1] 0
          %433 = vst [vmem:[%s417 + $0x4] sm:$0xf] 0
          %434 = vst [vmem:[%s417 + $0xc] sm:$0xf] 0
          %435 = vst [vmem:[%s417 + $0x14] sm:$0xf] 0
          %436 = vst [vmem:[%s417 + $0x1c] sm:$0xf] 0
          %437 = vst [vmem:[%s417 + $0x24] sm:$0xf] 0
          %438 = vst [vmem:[%s417 + $0x2c] sm:$0xf] 0
          %439 = vst [vmem:[%s417 + $0x34] sm:$0xf] 0
          %440 = vst [vmem:[%s417 + $0x3c] sm:$0xf] 0
          %441 = vst [vmem:[%s417 + $0x44] sm:$0xf] 0
          %442 = vst [vmem:[%s417 + $0x4c] sm:$0xf] 0
        $region60: #{tpu_custom_call.1} parent=43 // pred_fallthru
          _
        %v443 = vld [vmem:[%s295] sm:$0xf]
        %v444 = vld [vmem:[%s295 + $0x4] sm:$0xf]
        %v445 = vld [vmem:[%s295 + $0x8] sm:$0xf]
        %v446 = vld [vmem:[%s295 + $0xc] sm:$0xf]
        %v447 = vld [vmem:[%s295 + $0x10] sm:$0xf]
        %v448 = vld [vmem:[%s295 + $0x14] sm:$0xf]
        %v449 = vld [vmem:[%s295 + $0x18] sm:$0xf]
        %v450 = vld [vmem:[%s295 + $0x1c] sm:$0xf]
        %v459 = vrot.slane %v443, 7
        %v460 = vrot.slane %v459, 4
        %v461 = vrot.slane %v444, 7
        %v462 = vrot.slane %v461, 4
        %v463 = vrot.slane %v445, 7
        %v464 = vrot.slane %v463, 4
        %v465 = vrot.slane %v446, 7
        %v466 = vrot.slane %v465, 4
        %v467 = vrot.slane %v447, 7
        %v468 = vrot.slane %v467, 4
        %v469 = vrot.slane %v448, 7
        %v470 = vrot.slane %v469, 4
        %v471 = vrot.slane %v449, 7
        %v472 = vrot.slane %v471, 4
        %v473 = vrot.slane %v450, 7
        %v474 = vrot.slane %v473, 4
        %s491 = scalar_lea.vmem [#allocation2], 8
        %492 = vst [vmem:[%s491] sm:$0xe] %v459
        %493 = vst [vmem:[%s491 + $0x4] sm:$0x1] %v460
        %494 = vst [vmem:[%s491 + $0x8] sm:$0xe] %v461
        %495 = vst [vmem:[%s491 + $0xc] sm:$0x1] %v462
        %496 = vst [vmem:[%s491 + $0x10] sm:$0xe] %v463
        %497 = vst [vmem:[%s491 + $0x14] sm:$0x1] %v464
        %498 = vst [vmem:[%s491 + $0x18] sm:$0xe] %v465
        %499 = vst [vmem:[%s491 + $0x1c] sm:$0x1] %v466
        %500 = vst [vmem:[%s491 + $0x20] sm:$0xe] %v467
        %501 = vst [vmem:[%s491 + $0x24] sm:$0x1] %v468
        %502 = vst [vmem:[%s491 + $0x28] sm:$0xe] %v469
        %503 = vst [vmem:[%s491 + $0x2c] sm:$0x1] %v470
        %504 = vst [vmem:[%s491 + $0x30] sm:$0xe] %v471
        %505 = vst [vmem:[%s491 + $0x34] sm:$0x1] %v472
        %506 = vst [vmem:[%s491 + $0x38] sm:$0xe] %v473
        %507 = vst [vmem:[%s491 + $0x3c] sm:$0x1] %v474
        %v509 = vshrl.u32 %v443, 16
        %v511 = vrot.slane %v509, 7
        %v512 = vshll.u32 %v443, 16
        %v514 = vor.u32 %v511, %v512
        %v515 = vrot.slane %v511, 4
        %v517 = vshrl.u32 %v444, 16
        %v519 = vrot.slane %v517, 7
        %v520 = vshll.u32 %v444, 16
        %v522 = vor.u32 %v519, %v520
        %v523 = vrot.slane %v519, 4
        %v525 = vshrl.u32 %v445, 16
        %v527 = vrot.slane %v525, 7
        %v528 = vshll.u32 %v445, 16
        %v530 = vor.u32 %v527, %v528
        %v531 = vrot.slane %v527, 4
        %v533 = vshrl.u32 %v446, 16
        %v535 = vrot.slane %v533, 7
        %v536 = vshll.u32 %v446, 16
        %v538 = vor.u32 %v535, %v536
        %v539 = vrot.slane %v535, 4
        %v541 = vshrl.u32 %v447, 16
        %v543 = vrot.slane %v541, 7
        %v544 = vshll.u32 %v447, 16
        %v546 = vor.u32 %v543, %v544
        %v547 = vrot.slane %v543, 4
        %v549 = vshrl.u32 %v448, 16
        %v551 = vrot.slane %v549, 7
        %v552 = vshll.u32 %v448, 16
        %v554 = vor.u32 %v551, %v552
        %v555 = vrot.slane %v551, 4
        %v557 = vshrl.u32 %v449, 16
        %v559 = vrot.slane %v557, 7
        %v560 = vshll.u32 %v449, 16
        %v562 = vor.u32 %v559, %v560
        %v563 = vrot.slane %v559, 4
        %v565 = vshrl.u32 %v450, 16
        %v567 = vrot.slane %v565, 7
        %v568 = vshll.u32 %v450, 16
        %v570 = vor.u32 %v567, %v568
        %v571 = vrot.slane %v567, 4
        %s588 = scalar_lea.vmem [#allocation2], 88
        %vm589 = vcmask 1043456
        %vm590 = vsmask.f32 7938
        %vm591 = vmand %vm589, %vm590
        %v592 = vld [vmem:[%s588] sm:$0xf]
        %v593 = vsel %vm591, %v514, %v592
        %594 = vst [vmem:[%s588] sm:$0xf] %v593
        %vm595 = vcmask 1040384
        %vm596 = vsmask.f32 256
        %vm597 = vmand %vm595, %vm596
        %v598 = vld [vmem:[%s588 + $0x4] sm:$0x1]
        %v599 = vsel %vm597, %v515, %v598
        %600 = vst [vmem:[%s588 + $0x4] sm:$0x1] %v599
        %v601 = vld [vmem:[%s588 + $0x8] sm:$0xf]
        %v602 = vsel %vm591, %v522, %v601
        %603 = vst [vmem:[%s588 + $0x8] sm:$0xf] %v602
        %v604 = vld [vmem:[%s588 + $0xc] sm:$0x1]
        %v605 = vsel %vm597, %v523, %v604
        %606 = vst [vmem:[%s588 + $0xc] sm:$0x1] %v605
        %v607 = vld [vmem:[%s588 + $0x10] sm:$0xf]
        %v608 = vsel %vm591, %v530, %v607
        %609 = vst [vmem:[%s588 + $0x10] sm:$0xf] %v608
        %v610 = vld [vmem:[%s588 + $0x14] sm:$0x1]
        %v611 = vsel %vm597, %v531, %v610
        %612 = vst [vmem:[%s588 + $0x14] sm:$0x1] %v611
        %v613 = vld [vmem:[%s588 + $0x18] sm:$0xf]
        %v614 = vsel %vm591, %v538, %v613
        %615 = vst [vmem:[%s588 + $0x18] sm:$0xf] %v614
        %v616 = vld [vmem:[%s588 + $0x1c] sm:$0x1]
        %v617 = vsel %vm597, %v539, %v616
        %618 = vst [vmem:[%s588 + $0x1c] sm:$0x1] %v617
        %v619 = vld [vmem:[%s588 + $0x20] sm:$0xf]
        %v620 = vsel %vm591, %v546, %v619
        %621 = vst [vmem:[%s588 + $0x20] sm:$0xf] %v620
        %v622 = vld [vmem:[%s588 + $0x24] sm:$0x1]
        %v623 = vsel %vm597, %v547, %v622
        %624 = vst [vmem:[%s588 + $0x24] sm:$0x1] %v623
        %v625 = vld [vmem:[%s588 + $0x28] sm:$0xf]
        %v626 = vsel %vm591, %v554, %v625
        %627 = vst [vmem:[%s588 + $0x28] sm:$0xf] %v626
        %v628 = vld [vmem:[%s588 + $0x2c] sm:$0x1]
        %v629 = vsel %vm597, %v555, %v628
        %630 = vst [vmem:[%s588 + $0x2c] sm:$0x1] %v629
        %v631 = vld [vmem:[%s588 + $0x30] sm:$0xf]
        %v632 = vsel %vm591, %v562, %v631
        %633 = vst [vmem:[%s588 + $0x30] sm:$0xf] %v632
        %v634 = vld [vmem:[%s588 + $0x34] sm:$0x1]
        %v635 = vsel %vm597, %v563, %v634
        %636 = vst [vmem:[%s588 + $0x34] sm:$0x1] %v635
        %v637 = vld [vmem:[%s588 + $0x38] sm:$0xf]
        %v638 = vsel %vm591, %v570, %v637
        %639 = vst [vmem:[%s588 + $0x38] sm:$0xf] %v638
        %v640 = vld [vmem:[%s588 + $0x3c] sm:$0x1]
        %v641 = vsel %vm597, %v571, %v640
        %642 = vst [vmem:[%s588 + $0x3c] sm:$0x1] %v641
        %s643 = scalar_lea.vmem [#allocation2], 168
        %644 = vst [vmem:[%s643] sm:$0xf] %v443
        %645 = vst [vmem:[%s643 + $0x8] sm:$0xf] %v444
        %646 = vst [vmem:[%s643 + $0x10] sm:$0xf] %v445
        %647 = vst [vmem:[%s643 + $0x18] sm:$0xf] %v446
        %648 = vst [vmem:[%s643 + $0x20] sm:$0xf] %v447
        %649 = vst [vmem:[%s643 + $0x28] sm:$0xf] %v448
        %650 = vst [vmem:[%s643 + $0x30] sm:$0xf] %v449
        %651 = vst [vmem:[%s643 + $0x38] sm:$0xf] %v450
        %v652 = vld [vmem:[#allocation3] sm:$0xff]
        %v653 = vld [vmem:[#allocation3 + $0x8] sm:$0xff]
        %v654 = vld [vmem:[#allocation3 + $0x10] sm:$0xff]
        %v655 = vld [vmem:[#allocation3 + $0x18] sm:$0xff]
        %v656 = vld [vmem:[#allocation3 + $0x20] sm:$0xff]
        %v657 = vld [vmem:[#allocation3 + $0x28] sm:$0xff]
        %v658 = vld [vmem:[#allocation3 + $0x30] sm:$0xff]
        %v659 = vld [vmem:[#allocation3 + $0x38] sm:$0xff]
        %v660 = vld [vmem:[#allocation3 + $0x40] sm:$0xff]
        %v661 = vld [vmem:[#allocation3 + $0x48] sm:$0xff]
        %v662 = vld [vmem:[#allocation3 + $0x50] sm:$0xff]
        %v663 = vld [vmem:[#allocation3 + $0x58] sm:$0xff]
        %v664 = vld [vmem:[#allocation3 + $0x60] sm:$0xff]
        %v665 = vld [vmem:[#allocation3 + $0x68] sm:$0xff]
        %v666 = vld [vmem:[#allocation3 + $0x70] sm:$0xff]
        %v667 = vld [vmem:[#allocation3 + $0x78] sm:$0xff]
        %v668 = vld [vmem:[#allocation2] sm:$0xf]
        %v669 = vld [vmem:[#allocation2 + $0x4] sm:$0xf]
        %v670 = vld [vmem:[#allocation2 + $0x8] sm:$0xf]
        %v671 = vld [vmem:[#allocation2 + $0xc] sm:$0xf]
        %v672 = vld [vmem:[#allocation2 + $0x10] sm:$0xf]
        %v673 = vld [vmem:[#allocation2 + $0x14] sm:$0xf]
        %v674 = vld [vmem:[#allocation2 + $0x18] sm:$0xf]
        %v675 = vld [vmem:[#allocation2 + $0x1c] sm:$0xf]
        %v676 = vld [vmem:[#allocation2 + $0x20] sm:$0xf]
        %v677 = vld [vmem:[#allocation2 + $0x24] sm:$0xf]
        %v678 = vld [vmem:[#allocation2 + $0x28] sm:$0xf]
        %v679 = vld [vmem:[#allocation2 + $0x2c] sm:$0xf]
        %v680 = vld [vmem:[#allocation2 + $0x30] sm:$0xf]
        %v681 = vld [vmem:[#allocation2 + $0x34] sm:$0xf]
        %v682 = vld [vmem:[#allocation2 + $0x38] sm:$0xf]
        %v683 = vld [vmem:[#allocation2 + $0x3c] sm:$0xf]
        %v684 = vld [vmem:[#allocation2 + $0x40] sm:$0xf]
        %v685 = vld [vmem:[#allocation2 + $0x44] sm:$0xf]
        %v686 = vld [vmem:[#allocation2 + $0x48] sm:$0xf]
        %v687 = vld [vmem:[#allocation2 + $0x4c] sm:$0xf]
        %v688 = vld [vmem:[%s305] sm:$0xf]
        %v689 = vld [vmem:[%s305 + $0x4] sm:$0xf]
        %v690 = vld [vmem:[%s305 + $0x8] sm:$0xf]
        %v691 = vld [vmem:[%s305 + $0xc] sm:$0xf]
        %v692 = vld [vmem:[%s305 + $0x10] sm:$0xf]
        %v693 = vld [vmem:[%s305 + $0x14] sm:$0xf]
        %v694 = vld [vmem:[%s305 + $0x18] sm:$0xf]
        %v695 = vld [vmem:[%s305 + $0x1c] sm:$0xf]
        %v696 = vld [vmem:[%s305 + $0x20] sm:$0xf]
        %v697 = vld [vmem:[%s305 + $0x24] sm:$0xf]
        %v698 = vld [vmem:[%s305 + $0x28] sm:$0xf]
        %v699 = vld [vmem:[%s305 + $0x2c] sm:$0xf]
        %v700 = vld [vmem:[%s305 + $0x30] sm:$0xf]
        %v701 = vld [vmem:[%s305 + $0x34] sm:$0xf]
        %v702 = vld [vmem:[%s305 + $0x38] sm:$0xf]
        %v703 = vld [vmem:[%s305 + $0x3c] sm:$0xf]
        %v720 = vunpack.c.l.b16 %v668
        %v721 = vunpack.c.l.b16 %v669
        %v722 = vunpack.c.l.b16 %v670
        %v723 = vunpack.c.l.b16 %v671
        %v724 = vunpack.c.l.b16 %v672
        %v725 = vunpack.c.l.b16 %v673
        %v726 = vunpack.c.l.b16 %v674
        %v727 = vunpack.c.l.b16 %v675
        %v728 = vunpack.c.l.b16 %v676
        %v729 = vunpack.c.l.b16 %v677
        %v730 = vunpack.c.l.b16 %v678
        %v731 = vunpack.c.l.b16 %v679
        %v732 = vunpack.c.l.b16 %v680
        %v733 = vunpack.c.l.b16 %v681
        %v734 = vunpack.c.l.b16 %v682
        %v735 = vunpack.c.l.b16 %v683
        %v736 = vpack.c.b16 %v721, %v720
        %v737 = vpack.c.b16 %v723, %v722
        %v738 = vpack.c.b16 %v725, %v724
        %v739 = vpack.c.b16 %v727, %v726
        %v740 = vpack.c.b16 %v729, %v728
        %v741 = vpack.c.b16 %v731, %v730
        %v742 = vpack.c.b16 %v733, %v732
        %v743 = vpack.c.b16 %v735, %v734
        %v768 = vunpack.c.l.b16 %v688
        %v769 = vunpack.c.l.b16 %v689
        %v770 = vunpack.c.l.b16 %v690
        %v771 = vunpack.c.l.b16 %v691
        %v772 = vunpack.c.l.b16 %v692
        %v773 = vunpack.c.l.b16 %v693
        %v774 = vunpack.c.l.b16 %v694
        %v775 = vunpack.c.l.b16 %v695
        %v776 = vunpack.c.l.b16 %v696
        %v777 = vunpack.c.l.b16 %v697
        %v778 = vunpack.c.l.b16 %v698
        %v779 = vunpack.c.l.b16 %v699
        %v780 = vunpack.c.l.b16 %v700
        %v781 = vunpack.c.l.b16 %v701
        %v782 = vunpack.c.l.b16 %v702
        %v783 = vunpack.c.l.b16 %v703
        %v784 = vpack.c.b16 %v769, %v768
        %v785 = vpack.c.b16 %v771, %v770
        %v786 = vpack.c.b16 %v773, %v772
        %v787 = vpack.c.b16 %v775, %v774
        %v788 = vpack.c.b16 %v777, %v776
        %v789 = vpack.c.b16 %v779, %v778
        %v790 = vpack.c.b16 %v781, %v780
        %v791 = vpack.c.b16 %v783, %v782
        %800 = vmatpush.bf16.msra.mxu0 %v791
        %801 = vmatpush.bf16.msra.mxu0 %v790
        %802 = vmatpush.bf16.msra.mxu0 %v789
        %803 = vmatpush.bf16.msra.mxu0 %v788
        %804 = vmatpush.bf16.msra.mxu0 %v787
        %805 = vmatpush.bf16.msra.mxu0 %v786
        %806 = vmatpush.bf16.msra.mxu0 %v785
        %807 = vmatpush.bf16.msra.mxu0 %v784
        %808 = vmatmul.bf16.gmra.mxu0 %v736
        %v809 = vpop.f32.mrf.mxu0
        %v810 = vadd.f32 0.0, %v809
        %v811 = vpop.f32.mrf.mxu0
        %v812 = vadd.f32 0.0, %v811
        %813 = vmatmul.bf16.gmra.mxu0 %v737
        %v814 = vpop.f32.mrf.mxu0
        %v815 = vadd.f32 0.0, %v814
        %v816 = vpop.f32.mrf.mxu0
        %v817 = vadd.f32 0.0, %v816
        %818 = vmatmul.bf16.gmra.mxu0 %v738
        %v819 = vpop.f32.mrf.mxu0
        %v820 = vadd.f32 0.0, %v819
        %v821 = vpop.f32.mrf.mxu0
        %v822 = vadd.f32 0.0, %v821
        %823 = vmatmul.bf16.gmra.mxu0 %v739
        %v824 = vpop.f32.mrf.mxu0
        %v825 = vadd.f32 0.0, %v824
        %v826 = vpop.f32.mrf.mxu0
        %v827 = vadd.f32 0.0, %v826
        %828 = vmatmul.bf16.gmra.mxu0 %v740
        %v829 = vpop.f32.mrf.mxu0
        %v830 = vadd.f32 0.0, %v829
        %v831 = vpop.f32.mrf.mxu0
        %v832 = vadd.f32 0.0, %v831
        %833 = vmatmul.bf16.gmra.mxu0 %v741
        %v834 = vpop.f32.mrf.mxu0
        %v835 = vadd.f32 0.0, %v834
        %v836 = vpop.f32.mrf.mxu0
        %v837 = vadd.f32 0.0, %v836
        %838 = vmatmul.bf16.gmra.mxu0 %v742
        %v839 = vpop.f32.mrf.mxu0
        %v840 = vadd.f32 0.0, %v839
        %v841 = vpop.f32.mrf.mxu0
        %v842 = vadd.f32 0.0, %v841
        %843 = vmatmul.bf16.gmra.mxu0 %v743
        %v844 = vpop.f32.mrf.mxu0
        %v845 = vadd.f32 0.0, %v844
        %v846 = vpop.f32.mrf.mxu0
        %v847 = vadd.f32 0.0, %v846
        %848 = vdwg.mxu0
        %v849 = vadd.f32 %v652, %v810
        %v850 = vadd.f32 %v653, %v812
        %v851 = vadd.f32 %v654, %v815
        %v852 = vadd.f32 %v655, %v817
        %v853 = vadd.f32 %v656, %v820
        %v854 = vadd.f32 %v657, %v822
        %v855 = vadd.f32 %v658, %v825
        %v856 = vadd.f32 %v659, %v827
        %v857 = vadd.f32 %v660, %v830
        %v858 = vadd.f32 %v661, %v832
        %v859 = vadd.f32 %v662, %v835
        %v860 = vadd.f32 %v663, %v837
        %v861 = vadd.f32 %v664, %v840
        %v862 = vadd.f32 %v665, %v842
        %v863 = vadd.f32 %v666, %v845
        %v864 = vadd.f32 %v667, %v847
        %s865 = scalar_lea.vmem %s305, 192 [#allocation7]
        %v866 = vld [vmem:[%s865] sm:$0xf]
        %v867 = vld [vmem:[%s865 + $0x4] sm:$0xf]
        %v868 = vld [vmem:[%s865 + $0x8] sm:$0xf]
        %v869 = vld [vmem:[%s865 + $0xc] sm:$0xf]
        %v870 = vld [vmem:[%s865 + $0x10] sm:$0xf]
        %v871 = vld [vmem:[%s865 + $0x14] sm:$0xf]
        %v872 = vld [vmem:[%s865 + $0x18] sm:$0xf]
        %v873 = vld [vmem:[%s865 + $0x1c] sm:$0xf]
        %v874 = vld [vmem:[%s865 + $0x20] sm:$0xf]
        %v875 = vld [vmem:[%s865 + $0x24] sm:$0xf]
        %v876 = vld [vmem:[%s865 + $0x28] sm:$0xf]
        %v877 = vld [vmem:[%s865 + $0x2c] sm:$0xf]
        %v878 = vld [vmem:[%s865 + $0x30] sm:$0xf]
        %v879 = vld [vmem:[%s865 + $0x34] sm:$0xf]
        %v880 = vld [vmem:[%s865 + $0x38] sm:$0xf]
        %v881 = vld [vmem:[%s865 + $0x3c] sm:$0xf]
        %v884 = vunpack.c.l.b16 %v684
        %v885 = vunpack.c.l.b16 %v685
        %v886 = vpack.c.b16 %v885, %v884
        %v904 = vunpack.c.l.b16 %v866
        %v905 = vunpack.c.l.b16 %v867
        %v906 = vunpack.c.l.b16 %v868
        %v907 = vunpack.c.l.b16 %v869
        %v908 = vunpack.c.l.b16 %v870
        %v909 = vunpack.c.l.b16 %v871
        %v910 = vunpack.c.l.b16 %v872
        %v911 = vunpack.c.l.b16 %v873
        %v912 = vunpack.c.l.b16 %v874
        %v913 = vunpack.c.l.b16 %v875
        %v914 = vunpack.c.l.b16 %v876
        %v915 = vunpack.c.l.b16 %v877
        %v916 = vunpack.c.l.b16 %v878
        %v917 = vunpack.c.l.b16 %v879
        %v918 = vunpack.c.l.b16 %v880
        %v919 = vunpack.c.l.b16 %v881
        %v920 = vpack.c.b16 %v905, %v904
        %v921 = vpack.c.b16 %v907, %v906
        %v922 = vpack.c.b16 %v909, %v908
        %v923 = vpack.c.b16 %v911, %v910
        %v924 = vpack.c.b16 %v913, %v912
        %v925 = vpack.c.b16 %v915, %v914
        %v926 = vpack.c.b16 %v917, %v916
        %v927 = vpack.c.b16 %v919, %v918
        %936 = vmatpush.bf16.msra.mxu0 %v927
        %937 = vmatpush.bf16.msra.mxu0 %v926
        %938 = vmatpush.bf16.msra.mxu0 %v925
        %939 = vmatpush.bf16.msra.mxu0 %v924
        %940 = vmatpush.bf16.msra.mxu0 %v923
        %941 = vmatpush.bf16.msra.mxu0 %v922
        %942 = vmatpush.bf16.msra.mxu0 %v921
        %943 = vmatpush.bf16.msra.mxu0 %v920
        %944 = vmatmul.bf16.gmra.mxu0 %v737
        %v945 = vpop.f32.mrf.mxu0
        %v946 = vadd.f32 0.0, %v945
        %v947 = vpop.f32.mrf.mxu0
        %v948 = vadd.f32 0.0, %v947
        %949 = vmatmul.bf16.gmra.mxu0 %v738
        %v950 = vpop.f32.mrf.mxu0
        %v951 = vadd.f32 0.0, %v950
        %v952 = vpop.f32.mrf.mxu0
        %v953 = vadd.f32 0.0, %v952
        %954 = vmatmul.bf16.gmra.mxu0 %v739
        %v955 = vpop.f32.mrf.mxu0
        %v956 = vadd.f32 0.0, %v955
        %v957 = vpop.f32.mrf.mxu0
        %v958 = vadd.f32 0.0, %v957
        %959 = vmatmul.bf16.gmra.mxu0 %v740
        %v960 = vpop.f32.mrf.mxu0
        %v961 = vadd.f32 0.0, %v960
        %v962 = vpop.f32.mrf.mxu0
        %v963 = vadd.f32 0.0, %v962
        %964 = vmatmul.bf16.gmra.mxu0 %v741
        %v965 = vpop.f32.mrf.mxu0
        %v966 = vadd.f32 0.0, %v965
        %v967 = vpop.f32.mrf.mxu0
        %v968 = vadd.f32 0.0, %v967
        %969 = vmatmul.bf16.gmra.mxu0 %v742
        %v970 = vpop.f32.mrf.mxu0
        %v971 = vadd.f32 0.0, %v970
        %v972 = vpop.f32.mrf.mxu0
        %v973 = vadd.f32 0.0, %v972
        %974 = vmatmul.bf16.gmra.mxu0 %v743
        %v975 = vpop.f32.mrf.mxu0
        %v976 = vadd.f32 0.0, %v975
        %v977 = vpop.f32.mrf.mxu0
        %v978 = vadd.f32 0.0, %v977
        %979 = vmatmul.bf16.gmra.mxu0 %v886
        %v980 = vpop.f32.mrf.mxu0
        %v981 = vadd.f32 0.0, %v980
        %v982 = vpop.f32.mrf.mxu0
        %v983 = vadd.f32 0.0, %v982
        %984 = vdwg.mxu0
        %v985 = vadd.f32 %v849, %v946
        %v986 = vadd.f32 %v850, %v948
        %v987 = vadd.f32 %v851, %v951
        %v988 = vadd.f32 %v852, %v953
        %v989 = vadd.f32 %v853, %v956
        %v990 = vadd.f32 %v854, %v958
        %v991 = vadd.f32 %v855, %v961
        %v992 = vadd.f32 %v856, %v963
        %v993 = vadd.f32 %v857, %v966
        %v994 = vadd.f32 %v858, %v968
        %v995 = vadd.f32 %v859, %v971
        %v996 = vadd.f32 %v860, %v973
        %v997 = vadd.f32 %v861, %v976
        %v998 = vadd.f32 %v862, %v978
        %v999 = vadd.f32 %v863, %v981
        %v1000 = vadd.f32 %v864, %v983
        %s1001 = scalar_lea.vmem %s305, 384 [#allocation7]
        %v1002 = vld [vmem:[%s1001] sm:$0xf]
        %v1003 = vld [vmem:[%s1001 + $0x4] sm:$0xf]
        %v1004 = vld [vmem:[%s1001 + $0x8] sm:$0xf]
        %v1005 = vld [vmem:[%s1001 + $0xc] sm:$0xf]
        %v1006 = vld [vmem:[%s1001 + $0x10] sm:$0xf]
        %v1007 = vld [vmem:[%s1001 + $0x14] sm:$0xf]
        %v1008 = vld [vmem:[%s1001 + $0x18] sm:$0xf]
        %v1009 = vld [vmem:[%s1001 + $0x1c] sm:$0xf]
        %v1010 = vld [vmem:[%s1001 + $0x20] sm:$0xf]
        %v1011 = vld [vmem:[%s1001 + $0x24] sm:$0xf]
        %v1012 = vld [vmem:[%s1001 + $0x28] sm:$0xf]
        %v1013 = vld [vmem:[%s1001 + $0x2c] sm:$0xf]
        %v1014 = vld [vmem:[%s1001 + $0x30] sm:$0xf]
        %v1015 = vld [vmem:[%s1001 + $0x34] sm:$0xf]
        %v1016 = vld [vmem:[%s1001 + $0x38] sm:$0xf]
        %v1017 = vld [vmem:[%s1001 + $0x3c] sm:$0xf]
        %v1020 = vunpack.c.l.b16 %v686
        %v1021 = vunpack.c.l.b16 %v687
        %v1022 = vpack.c.b16 %v1021, %v1020
        %v1040 = vunpack.c.l.b16 %v1002
        %v1041 = vunpack.c.l.b16 %v1003
        %v1042 = vunpack.c.l.b16 %v1004
        %v1043 = vunpack.c.l.b16 %v1005
        %v1044 = vunpack.c.l.b16 %v1006
        %v1045 = vunpack.c.l.b16 %v1007
        %v1046 = vunpack.c.l.b16 %v1008
        %v1047 = vunpack.c.l.b16 %v1009
        %v1048 = vunpack.c.l.b16 %v1010
        %v1049 = vunpack.c.l.b16 %v1011
        %v1050 = vunpack.c.l.b16 %v1012
        %v1051 = vunpack.c.l.b16 %v1013
        %v1052 = vunpack.c.l.b16 %v1014
        %v1053 = vunpack.c.l.b16 %v1015
        %v1054 = vunpack.c.l.b16 %v1016
        %v1055 = vunpack.c.l.b16 %v1017
        %v1056 = vpack.c.b16 %v1041, %v1040
        %v1057 = vpack.c.b16 %v1043, %v1042
        %v1058 = vpack.c.b16 %v1045, %v1044
        %v1059 = vpack.c.b16 %v1047, %v1046
        %v1060 = vpack.c.b16 %v1049, %v1048
        %v1061 = vpack.c.b16 %v1051, %v1050
        %v1062 = vpack.c.b16 %v1053, %v1052
        %v1063 = vpack.c.b16 %v1055, %v1054
        %1072 = vmatpush.bf16.msra.mxu0 %v1063
        %1073 = vmatpush.bf16.msra.mxu0 %v1062
        %1074 = vmatpush.bf16.msra.mxu0 %v1061
        %1075 = vmatpush.bf16.msra.mxu0 %v1060
        %1076 = vmatpush.bf16.msra.mxu0 %v1059
        %1077 = vmatpush.bf16.msra.mxu0 %v1058
        %1078 = vmatpush.bf16.msra.mxu0 %v1057
        %1079 = vmatpush.bf16.msra.mxu0 %v1056
        %1080 = vmatmul.bf16.gmra.mxu0 %v738
        %v1081 = vpop.f32.mrf.mxu0
        %v1082 = vadd.f32 0.0, %v1081
        %v1083 = vpop.f32.mrf.mxu0
        %v1084 = vadd.f32 0.0, %v1083
        %1085 = vmatmul.bf16.gmra.mxu0 %v739
        %v1086 = vpop.f32.mrf.mxu0
        %v1087 = vadd.f32 0.0, %v1086
        %v1088 = vpop.f32.mrf.mxu0
        %v1089 = vadd.f32 0.0, %v1088
        %1090 = vmatmul.bf16.gmra.mxu0 %v740
        %v1091 = vpop.f32.mrf.mxu0
        %v1092 = vadd.f32 0.0, %v1091
        %v1093 = vpop.f32.mrf.mxu0
        %v1094 = vadd.f32 0.0, %v1093
        %1095 = vmatmul.bf16.gmra.mxu0 %v741
        %v1096 = vpop.f32.mrf.mxu0
        %v1097 = vadd.f32 0.0, %v1096
        %v1098 = vpop.f32.mrf.mxu0
        %v1099 = vadd.f32 0.0, %v1098
        %1100 = vmatmul.bf16.gmra.mxu0 %v742
        %v1101 = vpop.f32.mrf.mxu0
        %v1102 = vadd.f32 0.0, %v1101
        %v1103 = vpop.f32.mrf.mxu0
        %v1104 = vadd.f32 0.0, %v1103
        %1105 = vmatmul.bf16.gmra.mxu0 %v743
        %v1106 = vpop.f32.mrf.mxu0
        %v1107 = vadd.f32 0.0, %v1106
        %v1108 = vpop.f32.mrf.mxu0
        %v1109 = vadd.f32 0.0, %v1108
        %1110 = vmatmul.bf16.gmra.mxu0 %v886
        %v1111 = vpop.f32.mrf.mxu0
        %v1112 = vadd.f32 0.0, %v1111
        %v1113 = vpop.f32.mrf.mxu0
        %v1114 = vadd.f32 0.0, %v1113
        %1115 = vmatmul.bf16.gmra.mxu0 %v1022
        %v1116 = vpop.f32.mrf.mxu0
        %v1117 = vadd.f32 0.0, %v1116
        %v1118 = vpop.f32.mrf.mxu0
        %v1119 = vadd.f32 0.0, %v1118
        %1120 = vdwg.mxu0
        %v1121 = vadd.f32 %v985, %v1082
        %v1122 = vadd.f32 %v986, %v1084
        %v1123 = vadd.f32 %v987, %v1087
        %v1124 = vadd.f32 %v988, %v1089
        %v1125 = vadd.f32 %v989, %v1092
        %v1126 = vadd.f32 %v990, %v1094
        %v1127 = vadd.f32 %v991, %v1097
        %v1128 = vadd.f32 %v992, %v1099
        %v1129 = vadd.f32 %v993, %v1102
        %v1130 = vadd.f32 %v994, %v1104
        %v1131 = vadd.f32 %v995, %v1107
        %v1132 = vadd.f32 %v996, %v1109
        %v1133 = vadd.f32 %v997, %v1112
        %v1134 = vadd.f32 %v998, %v1114
        %v1135 = vadd.f32 %v999, %v1117
        %v1136 = vadd.f32 %v1000, %v1119
        %s1137 = scalar_lea.vmem [#allocation2], 80
        %v1138 = vld [vmem:[%s1137] sm:$0xf]
        %v1139 = vld [vmem:[%s1137 + $0x4] sm:$0xf]
        %v1140 = vld [vmem:[%s1137 + $0x8] sm:$0xf]
        %v1141 = vld [vmem:[%s1137 + $0xc] sm:$0xf]
        %v1142 = vld [vmem:[%s1137 + $0x10] sm:$0xf]
        %v1143 = vld [vmem:[%s1137 + $0x14] sm:$0xf]
        %v1144 = vld [vmem:[%s1137 + $0x18] sm:$0xf]
        %v1145 = vld [vmem:[%s1137 + $0x1c] sm:$0xf]
        %v1146 = vld [vmem:[%s1137 + $0x20] sm:$0xf]
        %v1147 = vld [vmem:[%s1137 + $0x24] sm:$0xf]
        %v1148 = vld [vmem:[%s1137 + $0x28] sm:$0xf]
        %v1149 = vld [vmem:[%s1137 + $0x2c] sm:$0xf]
        %v1150 = vld [vmem:[%s1137 + $0x30] sm:$0xf]
        %v1151 = vld [vmem:[%s1137 + $0x34] sm:$0xf]
        %v1152 = vld [vmem:[%s1137 + $0x38] sm:$0xf]
        %v1153 = vld [vmem:[%s1137 + $0x3c] sm:$0xf]
        %v1154 = vld [vmem:[%s1137 + $0x40] sm:$0xf]
        %v1155 = vld [vmem:[%s1137 + $0x44] sm:$0xf]
        %v1156 = vld [vmem:[%s1137 + $0x48] sm:$0xf]
        %v1157 = vld [vmem:[%s1137 + $0x4c] sm:$0xf]
        %s1158 = scalar_lea.vmem %s305, 64 [#allocation7]
        %v1159 = vld [vmem:[%s1158] sm:$0xf]
        %v1160 = vld [vmem:[%s1158 + $0x4] sm:$0xf]
        %v1161 = vld [vmem:[%s1158 + $0x8] sm:$0xf]
        %v1162 = vld [vmem:[%s1158 + $0xc] sm:$0xf]
        %v1163 = vld [vmem:[%s1158 + $0x10] sm:$0xf]
        %v1164 = vld [vmem:[%s1158 + $0x14] sm:$0xf]
        %v1165 = vld [vmem:[%s1158 + $0x18] sm:$0xf]
        %v1166 = vld [vmem:[%s1158 + $0x1c] sm:$0xf]
        %v1167 = vld [vmem:[%s1158 + $0x20] sm:$0xf]
        %v1168 = vld [vmem:[%s1158 + $0x24] sm:$0xf]
        %v1169 = vld [vmem:[%s1158 + $0x28] sm:$0xf]
        %v1170 = vld [vmem:[%s1158 + $0x2c] sm:$0xf]
        %v1171 = vld [vmem:[%s1158 + $0x30] sm:$0xf]
        %v1172 = vld [vmem:[%s1158 + $0x34] sm:$0xf]
        %v1173 = vld [vmem:[%s1158 + $0x38] sm:$0xf]
        %v1174 = vld [vmem:[%s1158 + $0x3c] sm:$0xf]
        %v1191 = vunpack.c.l.b16 %v1138
        %v1192 = vunpack.c.l.b16 %v1139
        %v1193 = vunpack.c.l.b16 %v1140
        %v1194 = vunpack.c.l.b16 %v1141
        %v1195 = vunpack.c.l.b16 %v1142
        %v1196 = vunpack.c.l.b16 %v1143
        %v1197 = vunpack.c.l.b16 %v1144
        %v1198 = vunpack.c.l.b16 %v1145
        %v1199 = vunpack.c.l.b16 %v1146
        %v1200 = vunpack.c.l.b16 %v1147
        %v1201 = vunpack.c.l.b16 %v1148
        %v1202 = vunpack.c.l.b16 %v1149
        %v1203 = vunpack.c.l.b16 %v1150
        %v1204 = vunpack.c.l.b16 %v1151
        %v1205 = vunpack.c.l.b16 %v1152
        %v1206 = vunpack.c.l.b16 %v1153
        %v1207 = vpack.c.b16 %v1192, %v1191
        %v1208 = vpack.c.b16 %v1194, %v1193
        %v1209 = vpack.c.b16 %v1196, %v1195
        %v1210 = vpack.c.b16 %v1198, %v1197
        %v1211 = vpack.c.b16 %v1200, %v1199
        %v1212 = vpack.c.b16 %v1202, %v1201
        %v1213 = vpack.c.b16 %v1204, %v1203
        %v1214 = vpack.c.b16 %v1206, %v1205
        %v1239 = vunpack.c.l.b16 %v1159
        %v1240 = vunpack.c.l.b16 %v1160
        %v1241 = vunpack.c.l.b16 %v1161
        %v1242 = vunpack.c.l.b16 %v1162
        %v1243 = vunpack.c.l.b16 %v1163
        %v1244 = vunpack.c.l.b16 %v1164
        %v1245 = vunpack.c.l.b16 %v1165
        %v1246 = vunpack.c.l.b16 %v1166
        %v1247 = vunpack.c.l.b16 %v1167
        %v1248 = vunpack.c.l.b16 %v1168
        %v1249 = vunpack.c.l.b16 %v1169
        %v1250 = vunpack.c.l.b16 %v1170
        %v1251 = vunpack.c.l.b16 %v1171
        %v1252 = vunpack.c.l.b16 %v1172
        %v1253 = vunpack.c.l.b16 %v1173
        %v1254 = vunpack.c.l.b16 %v1174
        %v1255 = vpack.c.b16 %v1240, %v1239
        %v1256 = vpack.c.b16 %v1242, %v1241
        %v1257 = vpack.c.b16 %v1244, %v1243
        %v1258 = vpack.c.b16 %v1246, %v1245
        %v1259 = vpack.c.b16 %v1248, %v1247
        %v1260 = vpack.c.b16 %v1250, %v1249
        %v1261 = vpack.c.b16 %v1252, %v1251
        %v1262 = vpack.c.b16 %v1254, %v1253
        %1271 = vmatpush.bf16.msra.mxu0 %v1262
        %1272 = vmatpush.bf16.msra.mxu0 %v1261
        %1273 = vmatpush.bf16.msra.mxu0 %v1260
        %1274 = vmatpush.bf16.msra.mxu0 %v1259
        %1275 = vmatpush.bf16.msra.mxu0 %v1258
        %1276 = vmatpush.bf16.msra.mxu0 %v1257
        %1277 = vmatpush.bf16.msra.mxu0 %v1256
        %1278 = vmatpush.bf16.msra.mxu0 %v1255
        %1279 = vmatmul.bf16.gmra.mxu0 %v1207
        %v1280 = vpop.f32.mrf.mxu0
        %v1281 = vadd.f32 0.0, %v1280
        %v1282 = vpop.f32.mrf.mxu0
        %v1283 = vadd.f32 0.0, %v1282
        %1284 = vmatmul.bf16.gmra.mxu0 %v1208
        %v1285 = vpop.f32.mrf.mxu0
        %v1286 = vadd.f32 0.0, %v1285
        %v1287 = vpop.f32.mrf.mxu0
        %v1288 = vadd.f32 0.0, %v1287
        %1289 = vmatmul.bf16.gmra.mxu0 %v1209
        %v1290 = vpop.f32.mrf.mxu0
        %v1291 = vadd.f32 0.0, %v1290
        %v1292 = vpop.f32.mrf.mxu0
        %v1293 = vadd.f32 0.0, %v1292
        %1294 = vmatmul.bf16.gmra.mxu0 %v1210
        %v1295 = vpop.f32.mrf.mxu0
        %v1296 = vadd.f32 0.0, %v1295
        %v1297 = vpop.f32.mrf.mxu0
        %v1298 = vadd.f32 0.0, %v1297
        %1299 = vmatmul.bf16.gmra.mxu0 %v1211
        %v1300 = vpop.f32.mrf.mxu0
        %v1301 = vadd.f32 0.0, %v1300
        %v1302 = vpop.f32.mrf.mxu0
        %v1303 = vadd.f32 0.0, %v1302
        %1304 = vmatmul.bf16.gmra.mxu0 %v1212
        %v1305 = vpop.f32.mrf.mxu0
        %v1306 = vadd.f32 0.0, %v1305
        %v1307 = vpop.f32.mrf.mxu0
        %v1308 = vadd.f32 0.0, %v1307
        %1309 = vmatmul.bf16.gmra.mxu0 %v1213
        %v1310 = vpop.f32.mrf.mxu0
        %v1311 = vadd.f32 0.0, %v1310
        %v1312 = vpop.f32.mrf.mxu0
        %v1313 = vadd.f32 0.0, %v1312
        %1314 = vmatmul.bf16.gmra.mxu0 %v1214
        %v1315 = vpop.f32.mrf.mxu0
        %v1316 = vadd.f32 0.0, %v1315
        %v1317 = vpop.f32.mrf.mxu0
        %v1318 = vadd.f32 0.0, %v1317
        %1319 = vdwg.mxu0
        %v1320 = vadd.f32 %v1121, %v1281
        %v1321 = vadd.f32 %v1122, %v1283
        %v1322 = vadd.f32 %v1123, %v1286
        %v1323 = vadd.f32 %v1124, %v1288
        %v1324 = vadd.f32 %v1125, %v1291
        %v1325 = vadd.f32 %v1126, %v1293
        %v1326 = vadd.f32 %v1127, %v1296
        %v1327 = vadd.f32 %v1128, %v1298
        %v1328 = vadd.f32 %v1129, %v1301
        %v1329 = vadd.f32 %v1130, %v1303
        %v1330 = vadd.f32 %v1131, %v1306
        %v1331 = vadd.f32 %v1132, %v1308
        %v1332 = vadd.f32 %v1133, %v1311
        %v1333 = vadd.f32 %v1134, %v1313
        %v1334 = vadd.f32 %v1135, %v1316
        %v1335 = vadd.f32 %v1136, %v1318
        %s1336 = scalar_lea.vmem %s305, 256 [#allocation7]
        %v1337 = vld [vmem:[%s1336] sm:$0xf]
        %v1338 = vld [vmem:[%s1336 + $0x4] sm:$0xf]
        %v1339 = vld [vmem:[%s1336 + $0x8] sm:$0xf]
        %v1340 = vld [vmem:[%s1336 + $0xc] sm:$0xf]
        %v1341 = vld [vmem:[%s1336 + $0x10] sm:$0xf]
        %v1342 = vld [vmem:[%s1336 + $0x14] sm:$0xf]
        %v1343 = vld [vmem:[%s1336 + $0x18] sm:$0xf]
        %v1344 = vld [vmem:[%s1336 + $0x1c] sm:$0xf]
        %v1345 = vld [vmem:[%s1336 + $0x20] sm:$0xf]
        %v1346 = vld [vmem:[%s1336 + $0x24] sm:$0xf]
        %v1347 = vld [vmem:[%s1336 + $0x28] sm:$0xf]
        %v1348 = vld [vmem:[%s1336 + $0x2c] sm:$0xf]
        %v1349 = vld [vmem:[%s1336 + $0x30] sm:$0xf]
        %v1350 = vld [vmem:[%s1336 + $0x34] sm:$0xf]
        %v1351 = vld [vmem:[%s1336 + $0x38] sm:$0xf]
        %v1352 = vld [vmem:[%s1336 + $0x3c] sm:$0xf]
        %v1355 = vunpack.c.l.b16 %v1154
        %v1356 = vunpack.c.l.b16 %v1155
        %v1357 = vpack.c.b16 %v1356, %v1355
        %v1375 = vunpack.c.l.b16 %v1337
        %v1376 = vunpack.c.l.b16 %v1338
        %v1377 = vunpack.c.l.b16 %v1339
        %v1378 = vunpack.c.l.b16 %v1340
        %v1379 = vunpack.c.l.b16 %v1341
        %v1380 = vunpack.c.l.b16 %v1342
        %v1381 = vunpack.c.l.b16 %v1343
        %v1382 = vunpack.c.l.b16 %v1344
        %v1383 = vunpack.c.l.b16 %v1345
        %v1384 = vunpack.c.l.b16 %v1346
        %v1385 = vunpack.c.l.b16 %v1347
        %v1386 = vunpack.c.l.b16 %v1348
        %v1387 = vunpack.c.l.b16 %v1349
        %v1388 = vunpack.c.l.b16 %v1350
        %v1389 = vunpack.c.l.b16 %v1351
        %v1390 = vunpack.c.l.b16 %v1352
        %v1391 = vpack.c.b16 %v1376, %v1375
        %v1392 = vpack.c.b16 %v1378, %v1377
        %v1393 = vpack.c.b16 %v1380, %v1379
        %v1394 = vpack.c.b16 %v1382, %v1381
        %v1395 = vpack.c.b16 %v1384, %v1383
        %v1396 = vpack.c.b16 %v1386, %v1385
        %v1397 = vpack.c.b16 %v1388, %v1387
        %v1398 = vpack.c.b16 %v1390, %v1389
        %1407 = vmatpush.bf16.msra.mxu0 %v1398
        %1408 = vmatpush.bf16.msra.mxu0 %v1397
        %1409 = vmatpush.bf16.msra.mxu0 %v1396
        %1410 = vmatpush.bf16.msra.mxu0 %v1395
        %1411 = vmatpush.bf16.msra.mxu0 %v1394
        %1412 = vmatpush.bf16.msra.mxu0 %v1393
        %1413 = vmatpush.bf16.msra.mxu0 %v1392
        %1414 = vmatpush.bf16.msra.mxu0 %v1391
        %1415 = vmatmul.bf16.gmra.mxu0 %v1208
        %v1416 = vpop.f32.mrf.mxu0
        %v1417 = vadd.f32 0.0, %v1416
        %v1418 = vpop.f32.mrf.mxu0
        %v1419 = vadd.f32 0.0, %v1418
        %1420 = vmatmul.bf16.gmra.mxu0 %v1209
        %v1421 = vpop.f32.mrf.mxu0
        %v1422 = vadd.f32 0.0, %v1421
        %v1423 = vpop.f32.mrf.mxu0
        %v1424 = vadd.f32 0.0, %v1423
        %1425 = vmatmul.bf16.gmra.mxu0 %v1210
        %v1426 = vpop.f32.mrf.mxu0
        %v1427 = vadd.f32 0.0, %v1426
        %v1428 = vpop.f32.mrf.mxu0
        %v1429 = vadd.f32 0.0, %v1428
        %1430 = vmatmul.bf16.gmra.mxu0 %v1211
        %v1431 = vpop.f32.mrf.mxu0
        %v1432 = vadd.f32 0.0, %v1431
        %v1433 = vpop.f32.mrf.mxu0
        %v1434 = vadd.f32 0.0, %v1433
        %1435 = vmatmul.bf16.gmra.mxu0 %v1212
        %v1436 = vpop.f32.mrf.mxu0
        %v1437 = vadd.f32 0.0, %v1436
        %v1438 = vpop.f32.mrf.mxu0
        %v1439 = vadd.f32 0.0, %v1438
        %1440 = vmatmul.bf16.gmra.mxu0 %v1213
        %v1441 = vpop.f32.mrf.mxu0
        %v1442 = vadd.f32 0.0, %v1441
        %v1443 = vpop.f32.mrf.mxu0
        %v1444 = vadd.f32 0.0, %v1443
        %1445 = vmatmul.bf16.gmra.mxu0 %v1214
        %v1446 = vpop.f32.mrf.mxu0
        %v1447 = vadd.f32 0.0, %v1446
        %v1448 = vpop.f32.mrf.mxu0
        %v1449 = vadd.f32 0.0, %v1448
        %1450 = vmatmul.bf16.gmra.mxu0 %v1357
        %v1451 = vpop.f32.mrf.mxu0
        %v1452 = vadd.f32 0.0, %v1451
        %v1453 = vpop.f32.mrf.mxu0
        %v1454 = vadd.f32 0.0, %v1453
        %1455 = vdwg.mxu0
        %v1456 = vadd.f32 %v1320, %v1417
        %v1457 = vadd.f32 %v1321, %v1419
        %v1458 = vadd.f32 %v1322, %v1422
        %v1459 = vadd.f32 %v1323, %v1424
        %v1460 = vadd.f32 %v1324, %v1427
        %v1461 = vadd.f32 %v1325, %v1429
        %v1462 = vadd.f32 %v1326, %v1432
        %v1463 = vadd.f32 %v1327, %v1434
        %v1464 = vadd.f32 %v1328, %v1437
        %v1465 = vadd.f32 %v1329, %v1439
        %v1466 = vadd.f32 %v1330, %v1442
        %v1467 = vadd.f32 %v1331, %v1444
        %v1468 = vadd.f32 %v1332, %v1447
        %v1469 = vadd.f32 %v1333, %v1449
        %v1470 = vadd.f32 %v1334, %v1452
        %v1471 = vadd.f32 %v1335, %v1454
        %s1472 = scalar_lea.vmem %s305, 448 [#allocation7]
        %v1473 = vld [vmem:[%s1472] sm:$0xf]
        %v1474 = vld [vmem:[%s1472 + $0x4] sm:$0xf]
        %v1475 = vld [vmem:[%s1472 + $0x8] sm:$0xf]
        %v1476 = vld [vmem:[%s1472 + $0xc] sm:$0xf]
        %v1477 = vld [vmem:[%s1472 + $0x10] sm:$0xf]
        %v1478 = vld [vmem:[%s1472 + $0x14] sm:$0xf]
        %v1479 = vld [vmem:[%s1472 + $0x18] sm:$0xf]
        %v1480 = vld [vmem:[%s1472 + $0x1c] sm:$0xf]
        %v1481 = vld [vmem:[%s1472 + $0x20] sm:$0xf]
        %v1482 = vld [vmem:[%s1472 + $0x24] sm:$0xf]
        %v1483 = vld [vmem:[%s1472 + $0x28] sm:$0xf]
        %v1484 = vld [vmem:[%s1472 + $0x2c] sm:$0xf]
        %v1485 = vld [vmem:[%s1472 + $0x30] sm:$0xf]
        %v1486 = vld [vmem:[%s1472 + $0x34] sm:$0xf]
        %v1487 = vld [vmem:[%s1472 + $0x38] sm:$0xf]
        %v1488 = vld [vmem:[%s1472 + $0x3c] sm:$0xf]
        %v1491 = vunpack.c.l.b16 %v1156
        %v1492 = vunpack.c.l.b16 %v1157
        %v1493 = vpack.c.b16 %v1492, %v1491
        %v1511 = vunpack.c.l.b16 %v1473
        %v1512 = vunpack.c.l.b16 %v1474
        %v1513 = vunpack.c.l.b16 %v1475
        %v1514 = vunpack.c.l.b16 %v1476
        %v1515 = vunpack.c.l.b16 %v1477
        %v1516 = vunpack.c.l.b16 %v1478
        %v1517 = vunpack.c.l.b16 %v1479
        %v1518 = vunpack.c.l.b16 %v1480
        %v1519 = vunpack.c.l.b16 %v1481
        %v1520 = vunpack.c.l.b16 %v1482
        %v1521 = vunpack.c.l.b16 %v1483
        %v1522 = vunpack.c.l.b16 %v1484
        %v1523 = vunpack.c.l.b16 %v1485
        %v1524 = vunpack.c.l.b16 %v1486
        %v1525 = vunpack.c.l.b16 %v1487
        %v1526 = vunpack.c.l.b16 %v1488
        %v1527 = vpack.c.b16 %v1512, %v1511
        %v1528 = vpack.c.b16 %v1514, %v1513
        %v1529 = vpack.c.b16 %v1516, %v1515
        %v1530 = vpack.c.b16 %v1518, %v1517
        %v1531 = vpack.c.b16 %v1520, %v1519
        %v1532 = vpack.c.b16 %v1522, %v1521
        %v1533 = vpack.c.b16 %v1524, %v1523
        %v1534 = vpack.c.b16 %v1526, %v1525
        %1543 = vmatpush.bf16.msra.mxu0 %v1534
        %1544 = vmatpush.bf16.msra.mxu0 %v1533
        %1545 = vmatpush.bf16.msra.mxu0 %v1532
        %1546 = vmatpush.bf16.msra.mxu0 %v1531
        %1547 = vmatpush.bf16.msra.mxu0 %v1530
        %1548 = vmatpush.bf16.msra.mxu0 %v1529
        %1549 = vmatpush.bf16.msra.mxu0 %v1528
        %1550 = vmatpush.bf16.msra.mxu0 %v1527
        %1551 = vmatmul.bf16.gmra.mxu0 %v1209
        %v1552 = vpop.f32.mrf.mxu0
        %v1553 = vadd.f32 0.0, %v1552
        %v1554 = vpop.f32.mrf.mxu0
        %v1555 = vadd.f32 0.0, %v1554
        %1556 = vmatmul.bf16.gmra.mxu0 %v1210
        %v1557 = vpop.f32.mrf.mxu0
        %v1558 = vadd.f32 0.0, %v1557
        %v1559 = vpop.f32.mrf.mxu0
        %v1560 = vadd.f32 0.0, %v1559
        %1561 = vmatmul.bf16.gmra.mxu0 %v1211
        %v1562 = vpop.f32.mrf.mxu0
        %v1563 = vadd.f32 0.0, %v1562
        %v1564 = vpop.f32.mrf.mxu0
        %v1565 = vadd.f32 0.0, %v1564
        %1566 = vmatmul.bf16.gmra.mxu0 %v1212
        %v1567 = vpop.f32.mrf.mxu0
        %v1568 = vadd.f32 0.0, %v1567
        %v1569 = vpop.f32.mrf.mxu0
        %v1570 = vadd.f32 0.0, %v1569
        %1571 = vmatmul.bf16.gmra.mxu0 %v1213
        %v1572 = vpop.f32.mrf.mxu0
        %v1573 = vadd.f32 0.0, %v1572
        %v1574 = vpop.f32.mrf.mxu0
        %v1575 = vadd.f32 0.0, %v1574
        %1576 = vmatmul.bf16.gmra.mxu0 %v1214
        %v1577 = vpop.f32.mrf.mxu0
        %v1578 = vadd.f32 0.0, %v1577
        %v1579 = vpop.f32.mrf.mxu0
        %v1580 = vadd.f32 0.0, %v1579
        %1581 = vmatmul.bf16.gmra.mxu0 %v1357
        %v1582 = vpop.f32.mrf.mxu0
        %v1583 = vadd.f32 0.0, %v1582
        %v1584 = vpop.f32.mrf.mxu0
        %v1585 = vadd.f32 0.0, %v1584
        %1586 = vmatmul.bf16.gmra.mxu0 %v1493
        %v1587 = vpop.f32.mrf.mxu0
        %v1588 = vadd.f32 0.0, %v1587
        %v1589 = vpop.f32.mrf.mxu0
        %v1590 = vadd.f32 0.0, %v1589
        %1591 = vdwg.mxu0
        %v1592 = vadd.f32 %v1456, %v1553
        %v1593 = vadd.f32 %v1457, %v1555
        %v1594 = vadd.f32 %v1458, %v1558
        %v1595 = vadd.f32 %v1459, %v1560
        %v1596 = vadd.f32 %v1460, %v1563
        %v1597 = vadd.f32 %v1461, %v1565
        %v1598 = vadd.f32 %v1462, %v1568
        %v1599 = vadd.f32 %v1463, %v1570
        %v1600 = vadd.f32 %v1464, %v1573
        %v1601 = vadd.f32 %v1465, %v1575
        %v1602 = vadd.f32 %v1466, %v1578
        %v1603 = vadd.f32 %v1467, %v1580
        %v1604 = vadd.f32 %v1468, %v1583
        %v1605 = vadd.f32 %v1469, %v1585
        %v1606 = vadd.f32 %v1470, %v1588
        %v1607 = vadd.f32 %v1471, %v1590
        %s1608 = scalar_lea.vmem [#allocation2], 160
        %v1609 = vld [vmem:[%s1608] sm:$0xf]
        %v1610 = vld [vmem:[%s1608 + $0x4] sm:$0xf]
        %v1611 = vld [vmem:[%s1608 + $0x8] sm:$0xf]
        %v1612 = vld [vmem:[%s1608 + $0xc] sm:$0xf]
        %v1613 = vld [vmem:[%s1608 + $0x10] sm:$0xf]
        %v1614 = vld [vmem:[%s1608 + $0x14] sm:$0xf]
        %v1615 = vld [vmem:[%s1608 + $0x18] sm:$0xf]
        %v1616 = vld [vmem:[%s1608 + $0x1c] sm:$0xf]
        %v1617 = vld [vmem:[%s1608 + $0x20] sm:$0xf]
        %v1618 = vld [vmem:[%s1608 + $0x24] sm:$0xf]
        %v1619 = vld [vmem:[%s1608 + $0x28] sm:$0xf]
        %v1620 = vld [vmem:[%s1608 + $0x2c] sm:$0xf]
        %v1621 = vld [vmem:[%s1608 + $0x30] sm:$0xf]
        %v1622 = vld [vmem:[%s1608 + $0x34] sm:$0xf]
        %v1623 = vld [vmem:[%s1608 + $0x38] sm:$0xf]
        %v1624 = vld [vmem:[%s1608 + $0x3c] sm:$0xf]
        %v1625 = vld [vmem:[%s1608 + $0x40] sm:$0xf]
        %v1626 = vld [vmem:[%s1608 + $0x44] sm:$0xf]
        %v1627 = vld [vmem:[%s1608 + $0x48] sm:$0xf]
        %v1628 = vld [vmem:[%s1608 + $0x4c] sm:$0xf]
        %s1629 = scalar_lea.vmem %s305, 128 [#allocation7]
        %v1630 = vld [vmem:[%s1629] sm:$0xf]
        %v1631 = vld [vmem:[%s1629 + $0x4] sm:$0xf]
        %v1632 = vld [vmem:[%s1629 + $0x8] sm:$0xf]
        %v1633 = vld [vmem:[%s1629 + $0xc] sm:$0xf]
        %v1634 = vld [vmem:[%s1629 + $0x10] sm:$0xf]
        %v1635 = vld [vmem:[%s1629 + $0x14] sm:$0xf]
        %v1636 = vld [vmem:[%s1629 + $0x18] sm:$0xf]
        %v1637 = vld [vmem:[%s1629 + $0x1c] sm:$0xf]
        %v1638 = vld [vmem:[%s1629 + $0x20] sm:$0xf]
        %v1639 = vld [vmem:[%s1629 + $0x24] sm:$0xf]
        %v1640 = vld [vmem:[%s1629 + $0x28] sm:$0xf]
        %v1641 = vld [vmem:[%s1629 + $0x2c] sm:$0xf]
        %v1642 = vld [vmem:[%s1629 + $0x30] sm:$0xf]
        %v1643 = vld [vmem:[%s1629 + $0x34] sm:$0xf]
        %v1644 = vld [vmem:[%s1629 + $0x38] sm:$0xf]
        %v1645 = vld [vmem:[%s1629 + $0x3c] sm:$0xf]
        %v1662 = vunpack.c.l.b16 %v1609
        %v1663 = vunpack.c.l.b16 %v1610
        %v1664 = vunpack.c.l.b16 %v1611
        %v1665 = vunpack.c.l.b16 %v1612
        %v1666 = vunpack.c.l.b16 %v1613
        %v1667 = vunpack.c.l.b16 %v1614
        %v1668 = vunpack.c.l.b16 %v1615
        %v1669 = vunpack.c.l.b16 %v1616
        %v1670 = vunpack.c.l.b16 %v1617
        %v1671 = vunpack.c.l.b16 %v1618
        %v1672 = vunpack.c.l.b16 %v1619
        %v1673 = vunpack.c.l.b16 %v1620
        %v1674 = vunpack.c.l.b16 %v1621
        %v1675 = vunpack.c.l.b16 %v1622
        %v1676 = vunpack.c.l.b16 %v1623
        %v1677 = vunpack.c.l.b16 %v1624
        %v1678 = vpack.c.b16 %v1663, %v1662
        %v1679 = vpack.c.b16 %v1665, %v1664
        %v1680 = vpack.c.b16 %v1667, %v1666
        %v1681 = vpack.c.b16 %v1669, %v1668
        %v1682 = vpack.c.b16 %v1671, %v1670
        %v1683 = vpack.c.b16 %v1673, %v1672
        %v1684 = vpack.c.b16 %v1675, %v1674
        %v1685 = vpack.c.b16 %v1677, %v1676
        %v1710 = vunpack.c.l.b16 %v1630
        %v1711 = vunpack.c.l.b16 %v1631
        %v1712 = vunpack.c.l.b16 %v1632
        %v1713 = vunpack.c.l.b16 %v1633
        %v1714 = vunpack.c.l.b16 %v1634
        %v1715 = vunpack.c.l.b16 %v1635
        %v1716 = vunpack.c.l.b16 %v1636
        %v1717 = vunpack.c.l.b16 %v1637
        %v1718 = vunpack.c.l.b16 %v1638
        %v1719 = vunpack.c.l.b16 %v1639
        %v1720 = vunpack.c.l.b16 %v1640
        %v1721 = vunpack.c.l.b16 %v1641
        %v1722 = vunpack.c.l.b16 %v1642
        %v1723 = vunpack.c.l.b16 %v1643
        %v1724 = vunpack.c.l.b16 %v1644
        %v1725 = vunpack.c.l.b16 %v1645
        %v1726 = vpack.c.b16 %v1711, %v1710
        %v1727 = vpack.c.b16 %v1713, %v1712
        %v1728 = vpack.c.b16 %v1715, %v1714
        %v1729 = vpack.c.b16 %v1717, %v1716
        %v1730 = vpack.c.b16 %v1719, %v1718
        %v1731 = vpack.c.b16 %v1721, %v1720
        %v1732 = vpack.c.b16 %v1723, %v1722
        %v1733 = vpack.c.b16 %v1725, %v1724
        %1742 = vmatpush.bf16.msra.mxu0 %v1733
        %1743 = vmatpush.bf16.msra.mxu0 %v1732
        %1744 = vmatpush.bf16.msra.mxu0 %v1731
        %1745 = vmatpush.bf16.msra.mxu0 %v1730
        %1746 = vmatpush.bf16.msra.mxu0 %v1729
        %1747 = vmatpush.bf16.msra.mxu0 %v1728
        %1748 = vmatpush.bf16.msra.mxu0 %v1727
        %1749 = vmatpush.bf16.msra.mxu0 %v1726
        %1750 = vmatmul.bf16.gmra.mxu0 %v1678
        %v1751 = vpop.f32.mrf.mxu0
        %v1752 = vadd.f32 0.0, %v1751
        %v1753 = vpop.f32.mrf.mxu0
        %v1754 = vadd.f32 0.0, %v1753
        %1755 = vmatmul.bf16.gmra.mxu0 %v1679
        %v1756 = vpop.f32.mrf.mxu0
        %v1757 = vadd.f32 0.0, %v1756
        %v1758 = vpop.f32.mrf.mxu0
        %v1759 = vadd.f32 0.0, %v1758
        %1760 = vmatmul.bf16.gmra.mxu0 %v1680
        %v1761 = vpop.f32.mrf.mxu0
        %v1762 = vadd.f32 0.0, %v1761
        %v1763 = vpop.f32.mrf.mxu0
        %v1764 = vadd.f32 0.0, %v1763
        %1765 = vmatmul.bf16.gmra.mxu0 %v1681
        %v1766 = vpop.f32.mrf.mxu0
        %v1767 = vadd.f32 0.0, %v1766
        %v1768 = vpop.f32.mrf.mxu0
        %v1769 = vadd.f32 0.0, %v1768
        %1770 = vmatmul.bf16.gmra.mxu0 %v1682
        %v1771 = vpop.f32.mrf.mxu0
        %v1772 = vadd.f32 0.0, %v1771
        %v1773 = vpop.f32.mrf.mxu0
        %v1774 = vadd.f32 0.0, %v1773
        %1775 = vmatmul.bf16.gmra.mxu0 %v1683
        %v1776 = vpop.f32.mrf.mxu0
        %v1777 = vadd.f32 0.0, %v1776
        %v1778 = vpop.f32.mrf.mxu0
        %v1779 = vadd.f32 0.0, %v1778
        %1780 = vmatmul.bf16.gmra.mxu0 %v1684
        %v1781 = vpop.f32.mrf.mxu0
        %v1782 = vadd.f32 0.0, %v1781
        %v1783 = vpop.f32.mrf.mxu0
        %v1784 = vadd.f32 0.0, %v1783
        %1785 = vmatmul.bf16.gmra.mxu0 %v1685
        %v1786 = vpop.f32.mrf.mxu0
        %v1787 = vadd.f32 0.0, %v1786
        %v1788 = vpop.f32.mrf.mxu0
        %v1789 = vadd.f32 0.0, %v1788
        %1790 = vdwg.mxu0
        %v1791 = vadd.f32 %v1592, %v1752
        %v1792 = vadd.f32 %v1593, %v1754
        %v1793 = vadd.f32 %v1594, %v1757
        %v1794 = vadd.f32 %v1595, %v1759
        %v1795 = vadd.f32 %v1596, %v1762
        %v1796 = vadd.f32 %v1597, %v1764
        %v1797 = vadd.f32 %v1598, %v1767
        %v1798 = vadd.f32 %v1599, %v1769
        %v1799 = vadd.f32 %v1600, %v1772
        %v1800 = vadd.f32 %v1601, %v1774
        %v1801 = vadd.f32 %v1602, %v1777
        %v1802 = vadd.f32 %v1603, %v1779
        %v1803 = vadd.f32 %v1604, %v1782
        %v1804 = vadd.f32 %v1605, %v1784
        %v1805 = vadd.f32 %v1606, %v1787
        %v1806 = vadd.f32 %v1607, %v1789
        %s1807 = scalar_lea.vmem %s305, 320 [#allocation7]
        %v1808 = vld [vmem:[%s1807] sm:$0xf]
        %v1809 = vld [vmem:[%s1807 + $0x4] sm:$0xf]
        %v1810 = vld [vmem:[%s1807 + $0x8] sm:$0xf]
        %v1811 = vld [vmem:[%s1807 + $0xc] sm:$0xf]
        %v1812 = vld [vmem:[%s1807 + $0x10] sm:$0xf]
        %v1813 = vld [vmem:[%s1807 + $0x14] sm:$0xf]
        %v1814 = vld [vmem:[%s1807 + $0x18] sm:$0xf]
        %v1815 = vld [vmem:[%s1807 + $0x1c] sm:$0xf]
        %v1816 = vld [vmem:[%s1807 + $0x20] sm:$0xf]
        %v1817 = vld [vmem:[%s1807 + $0x24] sm:$0xf]
        %v1818 = vld [vmem:[%s1807 + $0x28] sm:$0xf]
        %v1819 = vld [vmem:[%s1807 + $0x2c] sm:$0xf]
        %v1820 = vld [vmem:[%s1807 + $0x30] sm:$0xf]
        %v1821 = vld [vmem:[%s1807 + $0x34] sm:$0xf]
        %v1822 = vld [vmem:[%s1807 + $0x38] sm:$0xf]
        %v1823 = vld [vmem:[%s1807 + $0x3c] sm:$0xf]
        %v1826 = vunpack.c.l.b16 %v1625
        %v1827 = vunpack.c.l.b16 %v1626
        %v1828 = vpack.c.b16 %v1827, %v1826
        %v1846 = vunpack.c.l.b16 %v1808
        %v1847 = vunpack.c.l.b16 %v1809
        %v1848 = vunpack.c.l.b16 %v1810
        %v1849 = vunpack.c.l.b16 %v1811
        %v1850 = vunpack.c.l.b16 %v1812
        %v1851 = vunpack.c.l.b16 %v1813
        %v1852 = vunpack.c.l.b16 %v1814
        %v1853 = vunpack.c.l.b16 %v1815
        %v1854 = vunpack.c.l.b16 %v1816
        %v1855 = vunpack.c.l.b16 %v1817
        %v1856 = vunpack.c.l.b16 %v1818
        %v1857 = vunpack.c.l.b16 %v1819
        %v1858 = vunpack.c.l.b16 %v1820
        %v1859 = vunpack.c.l.b16 %v1821
        %v1860 = vunpack.c.l.b16 %v1822
        %v1861 = vunpack.c.l.b16 %v1823
        %v1862 = vpack.c.b16 %v1847, %v1846
        %v1863 = vpack.c.b16 %v1849, %v1848
        %v1864 = vpack.c.b16 %v1851, %v1850
        %v1865 = vpack.c.b16 %v1853, %v1852
        %v1866 = vpack.c.b16 %v1855, %v1854
        %v1867 = vpack.c.b16 %v1857, %v1856
        %v1868 = vpack.c.b16 %v1859, %v1858
        %v1869 = vpack.c.b16 %v1861, %v1860
        %1878 = vmatpush.bf16.msra.mxu0 %v1869
        %1879 = vmatpush.bf16.msra.mxu0 %v1868
        %1880 = vmatpush.bf16.msra.mxu0 %v1867
        %1881 = vmatpush.bf16.msra.mxu0 %v1866
        %1882 = vmatpush.bf16.msra.mxu0 %v1865
        %1883 = vmatpush.bf16.msra.mxu0 %v1864
        %1884 = vmatpush.bf16.msra.mxu0 %v1863
        %1885 = vmatpush.bf16.msra.mxu0 %v1862
        %1886 = vmatmul.bf16.gmra.mxu0 %v1679
        %v1887 = vpop.f32.mrf.mxu0
        %v1888 = vadd.f32 0.0, %v1887
        %v1889 = vpop.f32.mrf.mxu0
        %v1890 = vadd.f32 0.0, %v1889
        %1891 = vmatmul.bf16.gmra.mxu0 %v1680
        %v1892 = vpop.f32.mrf.mxu0
        %v1893 = vadd.f32 0.0, %v1892
        %v1894 = vpop.f32.mrf.mxu0
        %v1895 = vadd.f32 0.0, %v1894
        %1896 = vmatmul.bf16.gmra.mxu0 %v1681
        %v1897 = vpop.f32.mrf.mxu0
        %v1898 = vadd.f32 0.0, %v1897
        %v1899 = vpop.f32.mrf.mxu0
        %v1900 = vadd.f32 0.0, %v1899
        %1901 = vmatmul.bf16.gmra.mxu0 %v1682
        %v1902 = vpop.f32.mrf.mxu0
        %v1903 = vadd.f32 0.0, %v1902
        %v1904 = vpop.f32.mrf.mxu0
        %v1905 = vadd.f32 0.0, %v1904
        %1906 = vmatmul.bf16.gmra.mxu0 %v1683
        %v1907 = vpop.f32.mrf.mxu0
        %v1908 = vadd.f32 0.0, %v1907
        %v1909 = vpop.f32.mrf.mxu0
        %v1910 = vadd.f32 0.0, %v1909
        %1911 = vmatmul.bf16.gmra.mxu0 %v1684
        %v1912 = vpop.f32.mrf.mxu0
        %v1913 = vadd.f32 0.0, %v1912
        %v1914 = vpop.f32.mrf.mxu0
        %v1915 = vadd.f32 0.0, %v1914
        %1916 = vmatmul.bf16.gmra.mxu0 %v1685
        %v1917 = vpop.f32.mrf.mxu0
        %v1918 = vadd.f32 0.0, %v1917
        %v1919 = vpop.f32.mrf.mxu0
        %v1920 = vadd.f32 0.0, %v1919
        %1921 = vmatmul.bf16.gmra.mxu0 %v1828
        %v1922 = vpop.f32.mrf.mxu0
        %v1923 = vadd.f32 0.0, %v1922
        %v1924 = vpop.f32.mrf.mxu0
        %v1925 = vadd.f32 0.0, %v1924
        %1926 = vdwg.mxu0
        %v1927 = vadd.f32 %v1791, %v1888
        %v1928 = vadd.f32 %v1792, %v1890
        %v1929 = vadd.f32 %v1793, %v1893
        %v1930 = vadd.f32 %v1794, %v1895
        %v1931 = vadd.f32 %v1795, %v1898
        %v1932 = vadd.f32 %v1796, %v1900
        %v1933 = vadd.f32 %v1797, %v1903
        %v1934 = vadd.f32 %v1798, %v1905
        %v1935 = vadd.f32 %v1799, %v1908
        %v1936 = vadd.f32 %v1800, %v1910
        %v1937 = vadd.f32 %v1801, %v1913
        %v1938 = vadd.f32 %v1802, %v1915
        %v1939 = vadd.f32 %v1803, %v1918
        %v1940 = vadd.f32 %v1804, %v1920
        %v1941 = vadd.f32 %v1805, %v1923
        %v1942 = vadd.f32 %v1806, %v1925
        %s1943 = scalar_lea.vmem %s305, 512 [#allocation7]
        %v1944 = vld [vmem:[%s1943] sm:$0xf]
        %v1945 = vld [vmem:[%s1943 + $0x4] sm:$0xf]
        %v1946 = vld [vmem:[%s1943 + $0x8] sm:$0xf]
        %v1947 = vld [vmem:[%s1943 + $0xc] sm:$0xf]
        %v1948 = vld [vmem:[%s1943 + $0x10] sm:$0xf]
        %v1949 = vld [vmem:[%s1943 + $0x14] sm:$0xf]
        %v1950 = vld [vmem:[%s1943 + $0x18] sm:$0xf]
        %v1951 = vld [vmem:[%s1943 + $0x1c] sm:$0xf]
        %v1952 = vld [vmem:[%s1943 + $0x20] sm:$0xf]
        %v1953 = vld [vmem:[%s1943 + $0x24] sm:$0xf]
        %v1954 = vld [vmem:[%s1943 + $0x28] sm:$0xf]
        %v1955 = vld [vmem:[%s1943 + $0x2c] sm:$0xf]
        %v1956 = vld [vmem:[%s1943 + $0x30] sm:$0xf]
        %v1957 = vld [vmem:[%s1943 + $0x34] sm:$0xf]
        %v1958 = vld [vmem:[%s1943 + $0x38] sm:$0xf]
        %v1959 = vld [vmem:[%s1943 + $0x3c] sm:$0xf]
        %v1962 = vunpack.c.l.b16 %v1627
        %v1963 = vunpack.c.l.b16 %v1628
        %v1964 = vpack.c.b16 %v1963, %v1962
        %v1982 = vunpack.c.l.b16 %v1944
        %v1983 = vunpack.c.l.b16 %v1945
        %v1984 = vunpack.c.l.b16 %v1946
        %v1985 = vunpack.c.l.b16 %v1947
        %v1986 = vunpack.c.l.b16 %v1948
        %v1987 = vunpack.c.l.b16 %v1949
        %v1988 = vunpack.c.l.b16 %v1950
        %v1989 = vunpack.c.l.b16 %v1951
        %v1990 = vunpack.c.l.b16 %v1952
        %v1991 = vunpack.c.l.b16 %v1953
        %v1992 = vunpack.c.l.b16 %v1954
        %v1993 = vunpack.c.l.b16 %v1955
        %v1994 = vunpack.c.l.b16 %v1956
        %v1995 = vunpack.c.l.b16 %v1957
        %v1996 = vunpack.c.l.b16 %v1958
        %v1997 = vunpack.c.l.b16 %v1959
        %v1998 = vpack.c.b16 %v1983, %v1982
        %v1999 = vpack.c.b16 %v1985, %v1984
        %v2000 = vpack.c.b16 %v1987, %v1986
        %v2001 = vpack.c.b16 %v1989, %v1988
        %v2002 = vpack.c.b16 %v1991, %v1990
        %v2003 = vpack.c.b16 %v1993, %v1992
        %v2004 = vpack.c.b16 %v1995, %v1994
        %v2005 = vpack.c.b16 %v1997, %v1996
        %2014 = vmatpush.bf16.msra.mxu0 %v2005
        %2015 = vmatpush.bf16.msra.mxu0 %v2004
        %2016 = vmatpush.bf16.msra.mxu0 %v2003
        %2017 = vmatpush.bf16.msra.mxu0 %v2002
        %2018 = vmatpush.bf16.msra.mxu0 %v2001
        %2019 = vmatpush.bf16.msra.mxu0 %v2000
        %2020 = vmatpush.bf16.msra.mxu0 %v1999
        %2021 = vmatpush.bf16.msra.mxu0 %v1998
        %2022 = vmatmul.bf16.gmra.mxu0 %v1680
        %v2023 = vpop.f32.mrf.mxu0
        %v2024 = vadd.f32 0.0, %v2023
        %v2025 = vpop.f32.mrf.mxu0
        %v2026 = vadd.f32 0.0, %v2025
        %2027 = vmatmul.bf16.gmra.mxu0 %v1681
        %v2028 = vpop.f32.mrf.mxu0
        %v2029 = vadd.f32 0.0, %v2028
        %v2030 = vpop.f32.mrf.mxu0
        %v2031 = vadd.f32 0.0, %v2030
        %2032 = vmatmul.bf16.gmra.mxu0 %v1682
        %v2033 = vpop.f32.mrf.mxu0
        %v2034 = vadd.f32 0.0, %v2033
        %v2035 = vpop.f32.mrf.mxu0
        %v2036 = vadd.f32 0.0, %v2035
        %2037 = vmatmul.bf16.gmra.mxu0 %v1683
        %v2038 = vpop.f32.mrf.mxu0
        %v2039 = vadd.f32 0.0, %v2038
        %v2040 = vpop.f32.mrf.mxu0
        %v2041 = vadd.f32 0.0, %v2040
        %2042 = vmatmul.bf16.gmra.mxu0 %v1684
        %v2043 = vpop.f32.mrf.mxu0
        %v2044 = vadd.f32 0.0, %v2043
        %v2045 = vpop.f32.mrf.mxu0
        %v2046 = vadd.f32 0.0, %v2045
        %2047 = vmatmul.bf16.gmra.mxu0 %v1685
        %v2048 = vpop.f32.mrf.mxu0
        %v2049 = vadd.f32 0.0, %v2048
        %v2050 = vpop.f32.mrf.mxu0
        %v2051 = vadd.f32 0.0, %v2050
        %2052 = vmatmul.bf16.gmra.mxu0 %v1828
        %v2053 = vpop.f32.mrf.mxu0
        %v2054 = vadd.f32 0.0, %v2053
        %v2055 = vpop.f32.mrf.mxu0
        %v2056 = vadd.f32 0.0, %v2055
        %2057 = vmatmul.bf16.gmra.mxu0 %v1964
        %v2058 = vpop.f32.mrf.mxu0
        %v2059 = vadd.f32 0.0, %v2058
        %v2060 = vpop.f32.mrf.mxu0
        %v2061 = vadd.f32 0.0, %v2060
        %2062 = vdwg.mxu0
        %v2063 = vadd.f32 %v1927, %v2024
        %v2064 = vadd.f32 %v1928, %v2026
        %v2065 = vadd.f32 %v1929, %v2029
        %v2066 = vadd.f32 %v1930, %v2031
        %v2067 = vadd.f32 %v1931, %v2034
        %v2068 = vadd.f32 %v1932, %v2036
        %v2069 = vadd.f32 %v1933, %v2039
        %v2070 = vadd.f32 %v1934, %v2041
        %v2071 = vadd.f32 %v1935, %v2044
        %v2072 = vadd.f32 %v1936, %v2046
        %v2073 = vadd.f32 %v1937, %v2049
        %v2074 = vadd.f32 %v1938, %v2051
        %v2075 = vadd.f32 %v1939, %v2054
        %v2076 = vadd.f32 %v1940, %v2056
        %v2077 = vadd.f32 %v1941, %v2059
        %v2078 = vadd.f32 %v1942, %v2061
        %p2079 = scmp.lt.s32.totalorder %s31, 1
        // Predicated region
        $region61: #{tpu_custom_call.1} parent=43 // pred_check
          %p2080 = pneg %p2079
        $region62: #{tpu_custom_call.1} parent=43 // pred_check_branch
          %2082 = sbr.rel (%p2080) target = $region64
        $region63: #{tpu_custom_call.1} parent=43 // pred_region
          %2083 = vst [vmem:[#allocation3] sm:$0xff] %v2063
          %2084 = vst [vmem:[#allocation3 + $0x8] sm:$0xff] %v2064
          %2085 = vst [vmem:[#allocation3 + $0x10] sm:$0xff] %v2065
          %2086 = vst [vmem:[#allocation3 + $0x18] sm:$0xff] %v2066
          %2087 = vst [vmem:[#allocation3 + $0x20] sm:$0xff] %v2067
          %2088 = vst [vmem:[#allocation3 + $0x28] sm:$0xff] %v2068
          %2089 = vst [vmem:[#allocation3 + $0x30] sm:$0xff] %v2069
          %2090 = vst [vmem:[#allocation3 + $0x38] sm:$0xff] %v2070
          %2091 = vst [vmem:[#allocation3 + $0x40] sm:$0xff] %v2071
          %2092 = vst [vmem:[#allocation3 + $0x48] sm:$0xff] %v2072
          %2093 = vst [vmem:[#allocation3 + $0x50] sm:$0xff] %v2073
          %2094 = vst [vmem:[#allocation3 + $0x58] sm:$0xff] %v2074
          %2095 = vst [vmem:[#allocation3 + $0x60] sm:$0xff] %v2075
          %2096 = vst [vmem:[#allocation3 + $0x68] sm:$0xff] %v2076
          %2097 = vst [vmem:[#allocation3 + $0x70] sm:$0xff] %v2077
          %2098 = vst [vmem:[#allocation3 + $0x78] sm:$0xff] %v2078
        $region64: #{tpu_custom_call.1} parent=43 // pred_fallthru
          _
        %p2099 = scmp.eq.s32.totalorder %s31, 1
        // Predicated region
        $region65: #{tpu_custom_call.1} parent=43 // pred_check
          %p2100 = pneg %p2099
        $region66: #{tpu_custom_call.1} parent=43 // pred_check_branch
          %2102 = sbr.rel (%p2100) target = $region68
        $region67: #{tpu_custom_call.1} parent=43 // pred_region
          %v2103 = vld [vmem:[%s2] sm:$0x1]
          %v2105 = vperm.slane %v2103, 0
          %v2107 = vmul.f32 %v2063, %v2105
          %v2108 = vmul.f32 %v2064, %v2105
          %v2109 = vmul.f32 %v2065, %v2105
          %v2110 = vmul.f32 %v2066, %v2105
          %v2111 = vmul.f32 %v2067, %v2105
          %v2112 = vmul.f32 %v2068, %v2105
          %v2113 = vmul.f32 %v2069, %v2105
          %v2114 = vmul.f32 %v2070, %v2105
          %v2115 = vmul.f32 %v2071, %v2105
          %v2116 = vmul.f32 %v2072, %v2105
          %v2117 = vmul.f32 %v2073, %v2105
          %v2118 = vmul.f32 %v2074, %v2105
          %v2119 = vmul.f32 %v2075, %v2105
          %v2120 = vmul.f32 %v2076, %v2105
          %v2121 = vmul.f32 %v2077, %v2105
          %v2122 = vmul.f32 %v2078, %v2105
          %v2123 = vld [vmem:[%s3] sm:$0x1]
          %v2125 = vperm.slane %v2123, 0
          %v2127 = vadd.f32 %v2107, %v2125
          %v2128 = vadd.f32 %v2108, %v2125
          %v2129 = vadd.f32 %v2109, %v2125
          %v2130 = vadd.f32 %v2110, %v2125
          %v2131 = vadd.f32 %v2111, %v2125
          %v2132 = vadd.f32 %v2112, %v2125
          %v2133 = vadd.f32 %v2113, %v2125
          %v2134 = vadd.f32 %v2114, %v2125
          %v2135 = vadd.f32 %v2115, %v2125
          %v2136 = vadd.f32 %v2116, %v2125
          %v2137 = vadd.f32 %v2117, %v2125
          %v2138 = vadd.f32 %v2118, %v2125
          %v2139 = vadd.f32 %v2119, %v2125
          %v2140 = vadd.f32 %v2120, %v2125
          %v2141 = vadd.f32 %v2121, %v2125
          %v2142 = vadd.f32 %v2122, %v2125
          %v2143 = vmax.f32 %v2127, 0.0
          %v2144 = vmax.f32 %v2128, 0.0
          %v2145 = vmax.f32 %v2129, 0.0
          %v2146 = vmax.f32 %v2130, 0.0
          %v2147 = vmax.f32 %v2131, 0.0
          %v2148 = vmax.f32 %v2132, 0.0
          %v2149 = vmax.f32 %v2133, 0.0
          %v2150 = vmax.f32 %v2134, 0.0
          %v2151 = vmax.f32 %v2135, 0.0
          %v2152 = vmax.f32 %v2136, 0.0
          %v2153 = vmax.f32 %v2137, 0.0
          %v2154 = vmax.f32 %v2138, 0.0
          %v2155 = vmax.f32 %v2139, 0.0
          %v2156 = vmax.f32 %v2140, 0.0
          %v2157 = vmax.f32 %v2141, 0.0
          %v2158 = vmax.f32 %v2142, 0.0
          %v2159 = vpack.c.bf16 %v2144, %v2143
          %v2160 = vpack.c.bf16 %v2146, %v2145
          %v2161 = vpack.c.bf16 %v2148, %v2147
          %v2162 = vpack.c.bf16 %v2150, %v2149
          %v2163 = vpack.c.bf16 %v2152, %v2151
          %v2164 = vpack.c.bf16 %v2154, %v2153
          %v2165 = vpack.c.bf16 %v2156, %v2155
          %v2166 = vpack.c.bf16 %v2158, %v2157
          %v2167 = vld [vmem:[#allocation9] sm:$0xf]
          %v2168 = vld [vmem:[#allocation9 + $0x4] sm:$0xf]
          %v2169 = vld [vmem:[#allocation9 + $0x8] sm:$0xf]
          %v2170 = vld [vmem:[#allocation9 + $0xc] sm:$0xf]
          %v2171 = vld [vmem:[#allocation9 + $0x10] sm:$0xf]
          %v2172 = vld [vmem:[#allocation9 + $0x14] sm:$0xf]
          %v2173 = vld [vmem:[#allocation9 + $0x18] sm:$0xf]
          %v2174 = vld [vmem:[#allocation9 + $0x1c] sm:$0xf]
          %v2175 = vld [vmem:[#allocation9 + $0x20] sm:$0xf]
          %v2176 = vld [vmem:[#allocation9 + $0x24] sm:$0xf]
          %v2177 = vld [vmem:[#allocation9 + $0x28] sm:$0xf]
          %v2178 = vld [vmem:[#allocation9 + $0x2c] sm:$0xf]
          %v2179 = vld [vmem:[#allocation9 + $0x30] sm:$0xf]
          %v2180 = vld [vmem:[#allocation9 + $0x34] sm:$0xf]
          %v2181 = vld [vmem:[#allocation9 + $0x38] sm:$0xf]
          %v2182 = vld [vmem:[#allocation9 + $0x3c] sm:$0xf]
          %v2183 = vld [vmem:[%s5] sm:$0x1]
          %v2185 = vperm.slane %v2183, 0
          %v2203 = vunpack.c.l.b16 %v2167
          %v2204 = vunpack.c.l.b16 %v2168
          %v2205 = vunpack.c.l.b16 %v2169
          %v2206 = vunpack.c.l.b16 %v2170
          %v2207 = vunpack.c.l.b16 %v2171
          %v2208 = vunpack.c.l.b16 %v2172
          %v2209 = vunpack.c.l.b16 %v2173
          %v2210 = vunpack.c.l.b16 %v2174
          %v2211 = vunpack.c.l.b16 %v2175
          %v2212 = vunpack.c.l.b16 %v2176
          %v2213 = vunpack.c.l.b16 %v2177
          %v2214 = vunpack.c.l.b16 %v2178
          %v2215 = vunpack.c.l.b16 %v2179
          %v2216 = vunpack.c.l.b16 %v2180
          %v2217 = vunpack.c.l.b16 %v2181
          %v2218 = vunpack.c.l.b16 %v2182
          %v2219 = vpack.c.b16 %v2204, %v2203
          %v2220 = vpack.c.b16 %v2206, %v2205
          %v2221 = vpack.c.b16 %v2208, %v2207
          %v2222 = vpack.c.b16 %v2210, %v2209
          %v2223 = vpack.c.b16 %v2212, %v2211
          %v2224 = vpack.c.b16 %v2214, %v2213
          %v2225 = vpack.c.b16 %v2216, %v2215
          %v2226 = vpack.c.b16 %v2218, %v2217
          %2235 = vmatpush.bf16.msra.mxu0 %v2226
          %2236 = vmatpush.bf16.msra.mxu0 %v2225
          %2237 = vmatpush.bf16.msra.mxu0 %v2224
          %2238 = vmatpush.bf16.msra.mxu0 %v2223
          %2239 = vmatpush.bf16.msra.mxu0 %v2222
          %2240 = vmatpush.bf16.msra.mxu0 %v2221
          %2241 = vmatpush.bf16.msra.mxu0 %v2220
          %2242 = vmatpush.bf16.msra.mxu0 %v2219
          %2243 = vmatmul.bf16.gmra.mxu0 %v2159
          %v2244 = vpop.f32.mrf.mxu0
          %v2245 = vadd.f32 %v2185, %v2244
          %v2246 = vpop.f32.mrf.mxu0
          %v2247 = vadd.f32 %v2185, %v2246
          %2248 = vmatmul.bf16.gmra.mxu0 %v2160
          %v2249 = vpop.f32.mrf.mxu0
          %v2250 = vadd.f32 %v2185, %v2249
          %v2251 = vpop.f32.mrf.mxu0
          %v2252 = vadd.f32 %v2185, %v2251
          %2253 = vmatmul.bf16.gmra.mxu0 %v2161
          %v2254 = vpop.f32.mrf.mxu0
          %v2255 = vadd.f32 %v2185, %v2254
          %v2256 = vpop.f32.mrf.mxu0
          %v2257 = vadd.f32 %v2185, %v2256
          %2258 = vmatmul.bf16.gmra.mxu0 %v2162
          %v2259 = vpop.f32.mrf.mxu0
          %v2260 = vadd.f32 %v2185, %v2259
          %v2261 = vpop.f32.mrf.mxu0
          %v2262 = vadd.f32 %v2185, %v2261
          %2263 = vmatmul.bf16.gmra.mxu0 %v2163
          %v2264 = vpop.f32.mrf.mxu0
          %v2265 = vadd.f32 %v2185, %v2264
          %v2266 = vpop.f32.mrf.mxu0
          %v2267 = vadd.f32 %v2185, %v2266
          %2268 = vmatmul.bf16.gmra.mxu0 %v2164
          %v2269 = vpop.f32.mrf.mxu0
          %v2270 = vadd.f32 %v2185, %v2269
          %v2271 = vpop.f32.mrf.mxu0
          %v2272 = vadd.f32 %v2185, %v2271
          %2273 = vmatmul.bf16.gmra.mxu0 %v2165
          %v2274 = vpop.f32.mrf.mxu0
          %v2275 = vadd.f32 %v2185, %v2274
          %v2276 = vpop.f32.mrf.mxu0
          %v2277 = vadd.f32 %v2185, %v2276
          %2278 = vmatmul.bf16.gmra.mxu0 %v2166
          %v2279 = vpop.f32.mrf.mxu0
          %v2280 = vadd.f32 %v2185, %v2279
          %v2281 = vpop.f32.mrf.mxu0
          %v2282 = vadd.f32 %v2185, %v2281
          %2283 = vdwg.mxu0
          %2284 = vmax.xlane.f32.xlu0 %v2245
          %v2285 = vpop.xlane.xlu0 %2284
          %2286 = vmax.xlane.f32.xlu0 %v2247
          %v2287 = vpop.xlane.xlu0 %2286
          %2288 = vmax.xlane.f32.xlu0 %v2250
          %v2289 = vpop.xlane.xlu0 %2288
          %2290 = vmax.xlane.f32.xlu0 %v2252
          %v2291 = vpop.xlane.xlu0 %2290
          %2292 = vmax.xlane.f32.xlu0 %v2255
          %v2293 = vpop.xlane.xlu0 %2292
          %2294 = vmax.xlane.f32.xlu0 %v2257
          %v2295 = vpop.xlane.xlu0 %2294
          %2296 = vmax.xlane.f32.xlu0 %v2260
          %v2297 = vpop.xlane.xlu0 %2296
          %2298 = vmax.xlane.f32.xlu0 %v2262
          %v2299 = vpop.xlane.xlu0 %2298
          %2300 = vmax.xlane.f32.xlu0 %v2265
          %v2301 = vpop.xlane.xlu0 %2300
          %2302 = vmax.xlane.f32.xlu0 %v2267
          %v2303 = vpop.xlane.xlu0 %2302
          %2304 = vmax.xlane.f32.xlu0 %v2270
          %v2305 = vpop.xlane.xlu0 %2304
          %2306 = vmax.xlane.f32.xlu0 %v2272
          %v2307 = vpop.xlane.xlu0 %2306
          %2308 = vmax.xlane.f32.xlu0 %v2275
          %v2309 = vpop.xlane.xlu0 %2308
          %2310 = vmax.xlane.f32.xlu0 %v2277
          %v2311 = vpop.xlane.xlu0 %2310
          %2312 = vmax.xlane.f32.xlu0 %v2280
          %v2313 = vpop.xlane.xlu0 %2312
          %2314 = vmax.xlane.f32.xlu0 %v2282
          %v2315 = vpop.xlane.xlu0 %2314
          %v2316 = vsub.f32 %v2245, %v2285
          %v2317 = vsub.f32 %v2247, %v2287
          %v2318 = vsub.f32 %v2250, %v2289
          %v2319 = vsub.f32 %v2252, %v2291
          %v2320 = vsub.f32 %v2255, %v2293
          %v2321 = vsub.f32 %v2257, %v2295
          %v2322 = vsub.f32 %v2260, %v2297
          %v2323 = vsub.f32 %v2262, %v2299
          %v2324 = vsub.f32 %v2265, %v2301
          %v2325 = vsub.f32 %v2267, %v2303
          %v2326 = vsub.f32 %v2270, %v2305
          %v2327 = vsub.f32 %v2272, %v2307
          %v2328 = vsub.f32 %v2275, %v2309
          %v2329 = vsub.f32 %v2277, %v2311
          %v2330 = vsub.f32 %v2280, %v2313
          %v2331 = vsub.f32 %v2282, %v2315
          %v2332 = vmul.f32 %v2316, 1.442695
          %v2333 = vpow.pop %v2332
          %v2334 = vmul.f32 %v2317, 1.442695
          %v2335 = vpow.pop %v2334
          %v2336 = vmul.f32 %v2318, 1.442695
          %v2337 = vpow.pop %v2336
          %v2338 = vmul.f32 %v2319, 1.442695
          %v2339 = vpow.pop %v2338
          %v2340 = vmul.f32 %v2320, 1.442695
          %v2341 = vpow.pop %v2340
          %v2342 = vmul.f32 %v2321, 1.442695
          %v2343 = vpow.pop %v2342
          %v2344 = vmul.f32 %v2322, 1.442695
          %v2345 = vpow.pop %v2344
          %v2346 = vmul.f32 %v2323, 1.442695
          %v2347 = vpow.pop %v2346
          %v2348 = vmul.f32 %v2324, 1.442695
          %v2349 = vpow.pop %v2348
          %v2350 = vmul.f32 %v2325, 1.442695
          %v2351 = vpow.pop %v2350
          %v2352 = vmul.f32 %v2326, 1.442695
          %v2353 = vpow.pop %v2352
          %v2354 = vmul.f32 %v2327, 1.442695
          %v2355 = vpow.pop %v2354
          %v2356 = vmul.f32 %v2328, 1.442695
          %v2357 = vpow.pop %v2356
          %v2358 = vmul.f32 %v2329, 1.442695
          %v2359 = vpow.pop %v2358
          %v2360 = vmul.f32 %v2330, 1.442695
          %v2361 = vpow.pop %v2360
          %v2362 = vmul.f32 %v2331, 1.442695
          %v2363 = vpow.pop %v2362
          %2364 = vadd.xlane.f32.xlu0 %v2333
          %v2365 = vpop.xlane.xlu0 %2364
          %2366 = vadd.xlane.f32.xlu0 %v2335
          %v2367 = vpop.xlane.xlu0 %2366
          %2368 = vadd.xlane.f32.xlu0 %v2337
          %v2369 = vpop.xlane.xlu0 %2368
          %2370 = vadd.xlane.f32.xlu0 %v2339
          %v2371 = vpop.xlane.xlu0 %2370
          %2372 = vadd.xlane.f32.xlu0 %v2341
          %v2373 = vpop.xlane.xlu0 %2372
          %2374 = vadd.xlane.f32.xlu0 %v2343
          %v2375 = vpop.xlane.xlu0 %2374
          %2376 = vadd.xlane.f32.xlu0 %v2345
          %v2377 = vpop.xlane.xlu0 %2376
          %2378 = vadd.xlane.f32.xlu0 %v2347
          %v2379 = vpop.xlane.xlu0 %2378
          %2380 = vadd.xlane.f32.xlu0 %v2349
          %v2381 = vpop.xlane.xlu0 %2380
          %2382 = vadd.xlane.f32.xlu0 %v2351
          %v2383 = vpop.xlane.xlu0 %2382
          %2384 = vadd.xlane.f32.xlu0 %v2353
          %v2385 = vpop.xlane.xlu0 %2384
          %2386 = vadd.xlane.f32.xlu0 %v2355
          %v2387 = vpop.xlane.xlu0 %2386
          %2388 = vadd.xlane.f32.xlu0 %v2357
          %v2389 = vpop.xlane.xlu0 %2388
          %2390 = vadd.xlane.f32.xlu0 %v2359
          %v2391 = vpop.xlane.xlu0 %2390
          %2392 = vadd.xlane.f32.xlu0 %v2361
          %v2393 = vpop.xlane.xlu0 %2392
          %2394 = vadd.xlane.f32.xlu0 %v2363
          %v2395 = vpop.xlane.xlu0 %2394
          %v2396 = vlog2.pop %v2365
          %v2397 = vmul.f32 %v2396, 0.6931472
          %v2398 = vlog2.pop %v2367
          %v2399 = vmul.f32 %v2398, 0.6931472
          %v2400 = vlog2.pop %v2369
          %v2401 = vmul.f32 %v2400, 0.6931472
          %v2402 = vlog2.pop %v2371
          %v2403 = vmul.f32 %v2402, 0.6931472
          %v2404 = vlog2.pop %v2373
          %v2405 = vmul.f32 %v2404, 0.6931472
          %v2406 = vlog2.pop %v2375
          %v2407 = vmul.f32 %v2406, 0.6931472
          %v2408 = vlog2.pop %v2377
          %v2409 = vmul.f32 %v2408, 0.6931472
          %v2410 = vlog2.pop %v2379
          %v2411 = vmul.f32 %v2410, 0.6931472
          %v2412 = vlog2.pop %v2381
          %v2413 = vmul.f32 %v2412, 0.6931472
          %v2414 = vlog2.pop %v2383
          %v2415 = vmul.f32 %v2414, 0.6931472
          %v2416 = vlog2.pop %v2385
          %v2417 = vmul.f32 %v2416, 0.6931472
          %v2418 = vlog2.pop %v2387
          %v2419 = vmul.f32 %v2418, 0.6931472
          %v2420 = vlog2.pop %v2389
          %v2421 = vmul.f32 %v2420, 0.6931472
          %v2422 = vlog2.pop %v2391
          %v2423 = vmul.f32 %v2422, 0.6931472
          %v2424 = vlog2.pop %v2393
          %v2425 = vmul.f32 %v2424, 0.6931472
          %v2426 = vlog2.pop %v2395
          %v2427 = vmul.f32 %v2426, 0.6931472
          %v2428 = vsub.f32 %v2316, %v2397
          %v2429 = vsub.f32 %v2317, %v2399
          %v2430 = vsub.f32 %v2318, %v2401
          %v2431 = vsub.f32 %v2319, %v2403
          %v2432 = vsub.f32 %v2320, %v2405
          %v2433 = vsub.f32 %v2321, %v2407
          %v2434 = vsub.f32 %v2322, %v2409
          %v2435 = vsub.f32 %v2323, %v2411
          %v2436 = vsub.f32 %v2324, %v2413
          %v2437 = vsub.f32 %v2325, %v2415
          %v2438 = vsub.f32 %v2326, %v2417
          %v2439 = vsub.f32 %v2327, %v2419
          %v2440 = vsub.f32 %v2328, %v2421
          %v2441 = vsub.f32 %v2329, %v2423
          %v2442 = vsub.f32 %v2330, %v2425
          %v2443 = vsub.f32 %v2331, %v2427
          %2444 = vst [vmem:[%s344] sm:$0xff] %v2428
          %2445 = vst [vmem:[%s344 + $0x8] sm:$0xff] %v2429
          %2446 = vst [vmem:[%s344 + $0x10] sm:$0xff] %v2430
          %2447 = vst [vmem:[%s344 + $0x18] sm:$0xff] %v2431
          %2448 = vst [vmem:[%s344 + $0x20] sm:$0xff] %v2432
          %2449 = vst [vmem:[%s344 + $0x28] sm:$0xff] %v2433
          %2450 = vst [vmem:[%s344 + $0x30] sm:$0xff] %v2434
          %2451 = vst [vmem:[%s344 + $0x38] sm:$0xff] %v2435
          %2452 = vst [vmem:[%s344 + $0x40] sm:$0xff] %v2436
          %2453 = vst [vmem:[%s344 + $0x48] sm:$0xff] %v2437
          %2454 = vst [vmem:[%s344 + $0x50] sm:$0xff] %v2438
          %2455 = vst [vmem:[%s344 + $0x58] sm:$0xff] %v2439
          %2456 = vst [vmem:[%s344 + $0x60] sm:$0xff] %v2440
          %2457 = vst [vmem:[%s344 + $0x68] sm:$0xff] %v2441
          %2458 = vst [vmem:[%s344 + $0x70] sm:$0xff] %v2442
          %2459 = vst [vmem:[%s344 + $0x78] sm:$0xff] %v2443
        $region68: #{tpu_custom_call.1} parent=43 // pred_fallthru
          _
        %s2460 = sand.u32 %s184, 1
        %s2461 = scalar_lea.sflag [#allocation6], %s2460
        %s2462 = sand.u32 %s184, 1
        %s2463 = smul.addr %s2462, 128
        %s2464 = scalar_lea.vmem [#allocation10], %s2463
        // Predicated region
        $region69: #{tpu_custom_call.1} parent=43 // pred_check
          %p2465 = pneg %p194
        $region70: #{tpu_custom_call.1} parent=43 // pred_check_branch
          %2467 = sbr.rel (%p2465) target = $region72
        $region71: #{tpu_custom_call.1} parent=43 // pred_region
          %2469 = vsyncadd %s2461, 0
          %s2470 = smul.addr %s30, 16
          %s2471 = smul.addr %s2470, 8
          %s2472 = scalar_lea.hbm %s6, %s2471
          %s2473 = sshll.u32 %s2464, 4
          %s2474 = int_to_ptr.vmem [resolvable:$true] %s2473
          %s2475 = sshll.u32 %s2472, 4
          %s2476 = int_to_ptr.hbm [resolvable:$true] %s2475
          %2481 = dma.vmem_to_hbm [thread:$0]  %s2474, 2048, %s2476, %s2461, 128, 128, 8
        $region72: #{tpu_custom_call.1} parent=43 // pred_fallthru
          _
      $region44: #{tpu_custom_call.1} parent=5 // pred_fallthru
        _
      %p2482 = scmp.le.s32.totalorder 2, %s21
      // Predicated region
      $region73: #{tpu_custom_call.1} parent=5 // pred_check
        %p2483 = pneg %p2482
      $region74: #{tpu_custom_call.1} parent=5 // pred_check_branch
        %2485 = sbr.rel (%p2483) target = $region76
      $region75: #{tpu_custom_call.1} parent=5 // pred_region
        %s2486 = ssub.s32 %s21, 2
        // Predicated region
        $region77: #{tpu_custom_call.1} parent=75 // pred_check
          %p2487 = pneg %p200
        $region78: #{tpu_custom_call.1} parent=75 // pred_check_branch
          %2489 = sbr.rel (%p2487) target = $region80
        $region79: #{tpu_custom_call.1} parent=75 // pred_region
          %s2490 = sand.u32 %s185, 1
          %s2491 = scalar_lea.sflag [#allocation6], %s2490
          %s2492 = sand.u32 %s185, 1
          %s2493 = smul.addr %s2492, 128
          %s2494 = scalar_lea.vmem [#allocation10], %s2493
          %2496 = dma.done %s2491, 2048
        $region80: #{tpu_custom_call.1} parent=75 // pred_fallthru
          _
      $region76: #{tpu_custom_call.1} parent=5 // pred_fallthru
        _
    $region6: #{tpu_custom_call.1} parent=1 // loop_footer
      %s25 = sadd.s32 1, %s21
    $region7: #{tpu_custom_call.1} parent=1 // loop_footer_branch
      %20 = sbr.rel target = $region3
    $region8: #{tpu_custom_call.1} parent=1 // loop_exit
      _
    %2497 = vsyncpa [#allocation5], 1
    %s2498 = scalar_lea.sflag [#allocation5], 1
    %2499 = vsyncpa %s2498, 1
    %2500 = vsyncpa [#allocation8], 1
    %s2501 = scalar_lea.sflag [#allocation8], 1
    %2502 = vsyncpa %s2501, 1
    %2503 = vsyncpa [#allocation6], 1
    %s2504 = scalar_lea.sflag [#allocation6], 1
    %2505 = vsyncpa %s2504, 1

</llo_original>
